<compile_context>
chip_gen: v6e
topology: v6e:2x2x1
jax: 0.10.0
libtpu: 0.0.40
codegen_flags: <defaults>
</compile_context>

<pallas_src>
import math

import jax
import jax.numpy as jnp
import numpy as np
from jax.experimental import pallas as pl
from jax.experimental.pallas import tpu as pltpu  # noqa: F401  (not needed at this size)

# ---------------- problem sizes (small, consistent with the module) -------------
B = 2            # batch
PATCH = (2, 4)   # patch_shape  -> seq = 2*4 = 8
S = PATCH[0] * PATCH[1]
BS = B * S       # batch folded into rows (row n = b*S + s)
D = 32           # dim
H = 4            # num_heads
DH = 8           # dim_heads
HD = H * DH      # inner attention width
M = 64           # mlp_dim
EPS = 1e-5

DA = 40          # augmented contraction width: [x | 1 | 0-pad]  (bias folded into W)
LANES = 128

# ---------------- packed-slab row offsets (all regions start at lane 0) ----------
_R_WQKV0, _R_WQKV1 = 0, 96       # (96, DA)  -> reshaped (3*H, DH, DA) in-kernel
_R_WO0,   _R_WO1   = 96, 128     # (32, D)   -> reshaped (H, DH, D)
_R_W10,   _R_W11   = 128, 160    # (D, M)
_R_W20,   _R_W21   = 160, 224    # (M, D)
_R_VEC0,  _R_VEC1  = 224, 232    # (8, 128) packed 1-D params (one vreg)
SLAB_ROWS = _R_VEC1

# rows of the packed small-parameter tile
_ROW_BO, _ROW_B1, _ROW_B2 = 0, 1, 2
_ROW_LN1G, _ROW_LN1B, _ROW_LN2G, _ROW_LN2B = 3, 4, 5, 6


def _layernorm(y, gamma, beta):
    mean = jnp.mean(y, axis=-1, keepdims=True)
    var = jnp.mean((y - mean) ** 2, axis=-1, keepdims=True)
    return (y - mean) * jax.lax.rsqrt(var + EPS) * gamma + beta


def _gelu_tanh(y):
    # TODO(synk): PyTorch nn.GELU defaults to the exact erf form; tanh approximation is
    # used here (erf has no guaranteed Mosaic lowering); max abs diff ~1e-3 typical.
    c = math.sqrt(2.0 / math.pi)
    return 0.5 * y * (1.0 + jnp.tanh(c * (y + 0.044715 * y * y * y)))


def transformer_block_post_kernel(x_ref, slab_ref, o_ref):
    x_aug = x_ref[...]                # (BS, DA) f32 : [x | 1 | 0-pad]
    x = x_aug[:, 0:D]                 # (BS, D) — prefix lane slice, no lane shift

    vec = slab_ref[_R_VEC0:_R_VEC1, :]          # (8, 128) — single vreg of small params

    def vrow(r, n):                   # (1, n): broadcasts over the BS rows
        return vec[r:r + 1, 0:n]

    # ---- QKV projection: head-batched weights, biases folded via the ones column ----
    # weights stored per head transposed: wqkvT[g] = [W_g^T | b_g | 0], g = 12 = 3*H
    wqkv_t = slab_ref[_R_WQKV0:_R_WQKV1, 0:DA].reshape(3 * H, DH, DA)   # (12, 8, 40)
    xb = jnp.broadcast_to(x_aug[None, :, :], (3 * H, BS, DA))           # (12, 16, 40)
    # contraction on the last dim of both operands (the blessed 'bqd,bkd->bqk' pattern)
    qkv = jnp.einsum('gnd,ged->gne', xb, wqkv_t,
                     preferred_element_type=jnp.float32)                # (12, 16, 8)

    # Regroup rows so the matmul batch axis is (head, batch): g2 = h*B + b.
    # (4,16,8)->(8,8,8) only splits the 16-row sublane dim at an 8-row tile boundary
    # (S == 8), so these reshapes are layout-free — and no cross-batch mask is needed.
    qg = qkv[0:H].reshape(H * B, S, DH)          # (8, 8, 8)
    kg = qkv[H:2 * H].reshape(H * B, S, DH)
    vg = qkv[2 * H:3 * H].reshape(H * B, S, DH)

    # ---- attention (per head x batch group) ------------------------------------
    s = jnp.einsum('gqd,gkd->gqk', qg, kg,
                   preferred_element_type=jnp.float32) * (1.0 / math.sqrt(DH))
    s = s - jnp.max(s, axis=-1, keepdims=True)
    p = jnp.exp(s)
    p = p * pl.reciprocal(jnp.sum(p, axis=-1, keepdims=True), approx=True)
    og = jnp.einsum('gqk,gkd->gqd', p, vg,
                    preferred_element_type=jnp.float32)                 # (8, 8, 8)

    # ---- output projection absorbs the head concat ------------------------------
    oh = og.reshape(H, BS, DH)                                           # (4, 16, 8)
    wo_h = slab_ref[_R_WO0:_R_WO1, 0:D].reshape(H, DH, D)                # (4, 8, 32)
    attn = jnp.einsum('hnd,hde->hne', oh, wo_h,
                      preferred_element_type=jnp.float32)                # (4, 16, 32)
    attn_out = jnp.sum(attn, axis=0) + vrow(_ROW_BO, D) + x              # + residual

    h1 = _layernorm(attn_out, vrow(_ROW_LN1G, D), vrow(_ROW_LN1B, D))

    # ---- MLP ---------------------------------------------------------------------
    w1 = slab_ref[_R_W10:_R_W11, 0:M]                                    # (32, 64)
    w2 = slab_ref[_R_W20:_R_W21, 0:D]                                    # (64, 32)
    z = jnp.dot(h1, w1, preferred_element_type=jnp.float32) + vrow(_ROW_B1, M)
    z = _gelu_tanh(z)
    mlp_out = jnp.dot(z, w2, preferred_element_type=jnp.float32) + vrow(_ROW_B2, D)

    h2 = _layernorm(mlp_out + h1, vrow(_ROW_LN2G, D), vrow(_ROW_LN2B, D))
    o_ref[...] = h2.astype(o_ref.dtype)          # single sublane-dense (BS, D) store


# -------------------------- host-side packing ------------------------------------
def _pack_slab(p):
    """Pack every parameter into one (SLAB_ROWS, 128) f32 slab (one operand, one DMA)."""
    f32 = jnp.float32

    def pad_lanes(m):
        m = jnp.asarray(m, f32)
        return jnp.pad(m, ((0, 0), (0, LANES - m.shape[1])))

    def head_t_aug(w, bvec):
        # w: (D, H*DH), b: (H*DH,) -> (H, DH, DA): per-head W^T with bias folded in.
        wt = jnp.asarray(w, f32).reshape(D, H, DH).transpose(1, 2, 0)    # (H, DH, D)
        bt = jnp.asarray(bvec, f32).reshape(H, DH)[:, :, None]           # (H, DH, 1)
        z = jnp.zeros((H, DH, DA - D - 1), f32)
        return jnp.concatenate([wt, bt, z], axis=-1)                     # (H, DH, DA)

    wqkv_t = jnp.concatenate(
        [head_t_aug(p["wq"], p["bq"].reshape(-1)),
         head_t_aug(p["wk"], p["bk"].reshape(-1)),
         head_t_aug(p["wv"], p["bv"].reshape(-1))], axis=0)              # (3H, DH, DA)

    def vec_row(v):
        v = jnp.asarray(v, f32).reshape(-1)
        return jnp.pad(v, (0, LANES - v.shape[0]))

    vec = jnp.stack([vec_row(p["bo"]), vec_row(p["b1"]), vec_row(p["b2"]),
                     vec_row(p["ln1_g"]), vec_row(p["ln1_b"]),
                     vec_row(p["ln2_g"]), vec_row(p["ln2_b"]),
                     jnp.zeros((LANES,), f32)], axis=0)                  # (8, 128)

    slab = jnp.concatenate([
        pad_lanes(wqkv_t.reshape(3 * H * DH, DA)),   # rows   0.. 96
        pad_lanes(jnp.asarray(p["wo"], f32)),        # rows  96..128
        pad_lanes(jnp.asarray(p["w1"], f32)),        # rows 128..160
        pad_lanes(jnp.asarray(p["w2"], f32)),        # rows 160..224
        vec,                                         # rows 224..232
    ], axis=0)
    assert slab.shape == (SLAB_ROWS, LANES)
    return slab


def transformer_block_post(x, params):
    """x: (B, S, D) float32.  Returns (B, S, D) float32."""
    b, s, d = x.shape
    x2 = x.reshape(b * s, d)
    # augmented x: [x | 1 | 0] so the QKV biases ride inside the projection matmul
    x_aug = jnp.concatenate(
        [x2, jnp.ones((b * s, 1), x2.dtype), jnp.zeros((b * s, DA - d - 1), x2.dtype)],
        axis=1)
    slab = _pack_slab(params)

    out = pl.pallas_call(
        transformer_block_post_kernel,
        out_shape=jax.ShapeDtypeStruct((b * s, d), jnp.float32),
        # No grid: a single invocation, every operand fully resident in VMEM
        # (~130 KiB total, far below any VMEM limit on v5e/v6e/v7x).
    )(x_aug, slab)
    return out.reshape(b, s, d)


# -------------------------- pure-JAX reference ------------------------------------
def reference(x, p):
    q = x @ p["wq"] + p["bq"]
    k = x @ p["wk"] + p["bk"]
    v = x @ p["wv"] + p["bv"]
    q = q.reshape(B, S, H, DH).transpose(0, 2, 1, 3)
    k = k.reshape(B, S, H, DH).transpose(0, 2, 1, 3)
    v = v.reshape(B, S, H, DH).transpose(0, 2, 1, 3)
    s = jnp.einsum("bhqd,bhkd->bhqk", q, k) / math.sqrt(DH)
    a = jax.nn.softmax(s, axis=-1)
    o = jnp.einsum("bhqk,bhkd->bhqd", a, v).transpose(0, 2, 1, 3).reshape(B, S, HD)
    attn_out = o @ p["wo"] + p["bo"]

    def ln(y, g, b):
        mu = jnp.mean(y, axis=-1, keepdims=True)
        var = jnp.mean((y - mu) ** 2, axis=-1, keepdims=True)
        return (y - mu) * jax.lax.rsqrt(var + EPS) * g + b

    h1 = ln(attn_out + x, p["ln1_g"], p["ln1_b"])
    z = jax.nn.gelu(h1 @ p["w1"] + p["b1"], approximate=True)
    mlp_out = z @ p["w2"] + p["b2"]
    return ln(mlp_out + h1, p["ln2_g"], p["ln2_b"])


def init_params(key):
    ks = jax.random.split(key, 16)
    w = 0.05
    return {
        "wq": w * jax.random.normal(ks[0], (D, HD), jnp.float32),
        "bq": 0.01 * jax.random.normal(ks[1], (1, HD), jnp.float32),
        "wk": w * jax.random.normal(ks[2], (D, HD), jnp.float32),
        "bk": 0.01 * jax.random.normal(ks[3], (1, HD), jnp.float32),
        "wv": w * jax.random.normal(ks[4], (D, HD), jnp.float32),
        "bv": 0.01 * jax.random.normal(ks[5], (1, HD), jnp.float32),
        "wo": w * jax.random.normal(ks[6], (HD, D), jnp.float32),
        "bo": 0.01 * jax.random.normal(ks[7], (1, D), jnp.float32),
        "ln1_g": 1.0 + 0.05 * jax.random.normal(ks[8], (1, D), jnp.float32),
        "ln1_b": 0.02 * jax.random.normal(ks[9], (1, D), jnp.float32),
        "w1": w * jax.random.normal(ks[10], (D, M), jnp.float32),
        "b1": 0.01 * jax.random.normal(ks[11], (1, M), jnp.float32),
        "w2": w * jax.random.normal(ks[12], (M, D), jnp.float32),
        "b2": 0.01 * jax.random.normal(ks[13], (1, D), jnp.float32),
        "ln2_g": 1.0 + 0.05 * jax.random.normal(ks[14], (1, D), jnp.float32),
        "ln2_b": 0.02 * jax.random.normal(ks[15], (1, D), jnp.float32),
    }


if __name__ == "__main__":
    key = jax.random.PRNGKey(0)
    kx, kp = jax.random.split(key)
    x = jax.random.normal(kx, (B, S, D), jnp.float32)
    params = init_params(kp)

    out = jax.block_until_ready(transformer_block_post(x, params))
    ref = jax.block_until_ready(reference(x, params))
    # tolerance includes the ~2^-12..2^-14 relative error of the EUP approx reciprocal
    np.testing.assert_allclose(np.asarray(out), np.asarray(ref), atol=5e-4, rtol=5e-4)

    print("KERNEL_OK")
</pallas_src>

<mosaic_0001>
module attributes {stable_mosaic.version = 11 : i64} {
  func.func @transformer_block_post_kernel(%arg0: memref<16x40xf32, #tpu.memory_space<vmem>>, %arg1: memref<232x128xf32, #tpu.memory_space<vmem>>, %arg2: memref<16x32xf32, #tpu.memory_space<vmem>>) attributes {dimension_semantics = [], scalar_prefetch = 0 : i64, scratch_operands = 0 : i64, tpu.core_type = #tpu.core_type<tc>} {
    %c0 = arith.constant 0 : index
    %c0_0 = arith.constant 0 : index
    %0 = vector.load %arg0[%c0, %c0_0] : memref<16x40xf32, #tpu.memory_space<vmem>>, vector<16x40xf32>
    %1 = vector.extract_strided_slice %0 {offsets = [0, 0], sizes = [16, 32], strides = [1, 1]} : vector<16x40xf32> to vector<16x32xf32>
    %c224 = arith.constant 224 : index
    %c0_1 = arith.constant 0 : index
    %2 = vector.load %arg1[%c224, %c0_1] : memref<232x128xf32, #tpu.memory_space<vmem>>, vector<8x128xf32>
    %c0_2 = arith.constant 0 : index
    %c0_3 = arith.constant 0 : index
    %3 = vector.load %arg1[%c0_2, %c0_3] : memref<232x128xf32, #tpu.memory_space<vmem>>, vector<96x40xf32>
    %4 = vector.shape_cast %3 : vector<96x40xf32> to vector<12x8x40xf32>
    %5 = vector.shape_cast %0 : vector<16x40xf32> to vector<1x16x40xf32>
    %6 = vector.shape_cast %5 : vector<1x16x40xf32> to vector<1x16x40xf32>
    %7 = vector.broadcast %6 : vector<1x16x40xf32> to vector<12x16x40xf32>
    "tpu.trace_start"() <{level = 10 : i32, message = "gnd,ged->gne"}> : () -> ()
    %cst = arith.constant dense<0.000000e+00> : vector<12x16x8xf32>
    %8 = tpu.matmul %7, %4, %cst {dimension_numbers = #tpu.dot_dimension_numbers<[2], [2], [1], [1], [0, 0, 0, 1, 1, 1], [0], [0]>} : vector<12x16x40xf32>, vector<12x8x40xf32>, vector<12x16x8xf32> -> vector<12x16x8xf32>
    "tpu.trace_stop"() : () -> ()
    %9 = vector.extract_strided_slice %8 {offsets = [0, 0, 0], sizes = [4, 16, 8], strides = [1, 1, 1]} : vector<12x16x8xf32> to vector<4x16x8xf32>
    %10 = vector.shape_cast %9 : vector<4x16x8xf32> to vector<8x8x8xf32>
    %11 = vector.extract_strided_slice %8 {offsets = [4, 0, 0], sizes = [4, 16, 8], strides = [1, 1, 1]} : vector<12x16x8xf32> to vector<4x16x8xf32>
    %12 = vector.shape_cast %11 : vector<4x16x8xf32> to vector<8x8x8xf32>
    %13 = vector.extract_strided_slice %8 {offsets = [8, 0, 0], sizes = [4, 16, 8], strides = [1, 1, 1]} : vector<12x16x8xf32> to vector<4x16x8xf32>
    %14 = vector.shape_cast %13 : vector<4x16x8xf32> to vector<8x8x8xf32>
    "tpu.trace_start"() <{level = 10 : i32, message = "gqd,gkd->gqk"}> : () -> ()
    %cst_4 = arith.constant dense<0.000000e+00> : vector<8x8x8xf32>
    %15 = tpu.matmul %10, %12, %cst_4 {dimension_numbers = #tpu.dot_dimension_numbers<[2], [2], [1], [1], [0, 0, 0, 1, 1, 1], [0], [0]>} : vector<8x8x8xf32>, vector<8x8x8xf32>, vector<8x8x8xf32> -> vector<8x8x8xf32>
    "tpu.trace_stop"() : () -> ()
    %cst_5 = arith.constant 0.353553385 : f32
    %16 = vector.broadcast %cst_5 : f32 to vector<8x8x8xf32>
    %17 = arith.mulf %15, %16 : vector<8x8x8xf32>
    %cst_6 = arith.constant dense<0xFF800000> : vector<8x8xf32>
    %18 = vector.multi_reduction <maximumf>, %17, %cst_6 [2] : vector<8x8x8xf32> to vector<8x8xf32>
    %19 = vector.shape_cast %18 : vector<8x8xf32> to vector<8x8x1xf32>
    %20 = vector.broadcast %19 : vector<8x8x1xf32> to vector<8x8x8xf32>
    %21 = arith.subf %17, %20 : vector<8x8x8xf32>
    %22 = math.exp %21 : vector<8x8x8xf32>
    %cst_7 = arith.constant dense<0.000000e+00> : vector<8x8xf32>
    %23 = vector.multi_reduction <add>, %22, %cst_7 [2] : vector<8x8x8xf32> to vector<8x8xf32>
    %24 = vector.shape_cast %23 : vector<8x8xf32> to vector<8x8x1xf32>
    %25 = tpu.reciprocal %24 {approx = true} : vector<8x8x1xf32> -> vector<8x8x1xf32>
    %26 = vector.broadcast %25 : vector<8x8x1xf32> to vector<8x8x8xf32>
    %27 = arith.mulf %22, %26 : vector<8x8x8xf32>
    "tpu.trace_start"() <{level = 10 : i32, message = "gqk,gkd->gqd"}> : () -> ()
    %cst_8 = arith.constant dense<0.000000e+00> : vector<8x8x8xf32>
    %28 = tpu.matmul %27, %14, %cst_8 {dimension_numbers = #tpu.dot_dimension_numbers<[2], [1], [1], [2], [0, 0, 0, 1, 1, 2], [0], [0]>} : vector<8x8x8xf32>, vector<8x8x8xf32>, vector<8x8x8xf32> -> vector<8x8x8xf32>
    "tpu.trace_stop"() : () -> ()
    %29 = vector.shape_cast %28 : vector<8x8x8xf32> to vector<4x16x8xf32>
    %c96 = arith.constant 96 : index
    %c0_9 = arith.constant 0 : index
    %30 = vector.load %arg1[%c96, %c0_9] : memref<232x128xf32, #tpu.memory_space<vmem>>, vector<32x32xf32>
    %31 = vector.shape_cast %30 : vector<32x32xf32> to vector<4x8x32xf32>
    "tpu.trace_start"() <{level = 10 : i32, message = "hnd,hde->hne"}> : () -> ()
    %cst_10 = arith.constant dense<0.000000e+00> : vector<4x16x32xf32>
    %32 = tpu.matmul %29, %31, %cst_10 {dimension_numbers = #tpu.dot_dimension_numbers<[2], [1], [1], [2], [0, 0, 0, 1, 1, 2], [0], [0]>} : vector<4x16x8xf32>, vector<4x8x32xf32>, vector<4x16x32xf32> -> vector<4x16x32xf32>
    "tpu.trace_stop"() : () -> ()
    %cst_11 = arith.constant dense<0.000000e+00> : vector<16x32xf32>
    %33 = vector.multi_reduction <add>, %32, %cst_11 [0] : vector<4x16x32xf32> to vector<16x32xf32>
    %34 = vector.extract_strided_slice %2 {offsets = [0, 0], sizes = [1, 32], strides = [1, 1]} : vector<8x128xf32> to vector<1x32xf32>
    %35 = vector.broadcast %34 : vector<1x32xf32> to vector<16x32xf32>
    %36 = arith.addf %33, %35 : vector<16x32xf32>
    %37 = arith.addf %36, %1 : vector<16x32xf32>
    %38 = vector.extract_strided_slice %2 {offsets = [3, 0], sizes = [1, 32], strides = [1, 1]} : vector<8x128xf32> to vector<1x32xf32>
    %39 = vector.extract_strided_slice %2 {offsets = [4, 0], sizes = [1, 32], strides = [1, 1]} : vector<8x128xf32> to vector<1x32xf32>
    %cst_12 = arith.constant dense<0.000000e+00> : vector<16xf32>
    %40 = vector.multi_reduction <add>, %37, %cst_12 [1] : vector<16x32xf32> to vector<16xf32>
    %41 = vector.shape_cast %40 : vector<16xf32> to vector<16x1xf32>
    %cst_13 = arith.constant 3.200000e+01 : f32
    %42 = vector.broadcast %cst_13 : f32 to vector<16x1xf32>
    %43 = arith.divf %41, %42 : vector<16x1xf32>
    %44 = vector.broadcast %43 : vector<16x1xf32> to vector<16x32xf32>
    %45 = arith.subf %37, %44 : vector<16x32xf32>
    %46 = arith.mulf %45, %45 : vector<16x32xf32>
    %cst_14 = arith.constant dense<0.000000e+00> : vector<16xf32>
    %47 = vector.multi_reduction <add>, %46, %cst_14 [1] : vector<16x32xf32> to vector<16xf32>
    %48 = vector.shape_cast %47 : vector<16xf32> to vector<16x1xf32>
    %cst_15 = arith.constant 3.200000e+01 : f32
    %49 = vector.broadcast %cst_15 : f32 to vector<16x1xf32>
    %50 = arith.divf %48, %49 : vector<16x1xf32>
    %51 = vector.broadcast %43 : vector<16x1xf32> to vector<16x32xf32>
    %52 = arith.subf %37, %51 : vector<16x32xf32>
    %cst_16 = arith.constant 9.99999974E-6 : f32
    %53 = vector.broadcast %cst_16 : f32 to vector<16x1xf32>
    %54 = arith.addf %50, %53 : vector<16x1xf32>
    %55 = math.rsqrt %54 : vector<16x1xf32>
    %56 = vector.broadcast %55 : vector<16x1xf32> to vector<16x32xf32>
    %57 = arith.mulf %52, %56 : vector<16x32xf32>
    %58 = vector.broadcast %38 : vector<1x32xf32> to vector<16x32xf32>
    %59 = arith.mulf %57, %58 : vector<16x32xf32>
    %60 = vector.broadcast %39 : vector<1x32xf32> to vector<16x32xf32>
    %61 = arith.addf %59, %60 : vector<16x32xf32>
    %c128 = arith.constant 128 : index
    %c0_17 = arith.constant 0 : index
    %62 = vector.load %arg1[%c128, %c0_17] : memref<232x128xf32, #tpu.memory_space<vmem>>, vector<32x64xf32>
    %c160 = arith.constant 160 : index
    %c0_18 = arith.constant 0 : index
    %63 = vector.load %arg1[%c160, %c0_18] : memref<232x128xf32, #tpu.memory_space<vmem>>, vector<64x32xf32>
    %cst_19 = arith.constant dense<0.000000e+00> : vector<16x64xf32>
    %64 = tpu.matmul %61, %62, %cst_19 {dimension_numbers = #tpu.dot_dimension_numbers<[1], [0], [0], [1], [0, 0, 1, 1], [], []>} : vector<16x32xf32>, vector<32x64xf32>, vector<16x64xf32> -> vector<16x64xf32>
    %65 = vector.extract_strided_slice %2 {offsets = [1, 0], sizes = [1, 64], strides = [1, 1]} : vector<8x128xf32> to vector<1x64xf32>
    %66 = vector.broadcast %65 : vector<1x64xf32> to vector<16x64xf32>
    %67 = arith.addf %64, %66 : vector<16x64xf32>
    %cst_20 = arith.constant 5.000000e-01 : f32
    %68 = vector.broadcast %cst_20 : f32 to vector<16x64xf32>
    %69 = arith.mulf %68, %67 : vector<16x64xf32>
    %cst_21 = arith.constant 4.471500e-02 : f32
    %70 = vector.broadcast %cst_21 : f32 to vector<16x64xf32>
    %71 = arith.mulf %70, %67 : vector<16x64xf32>
    %72 = arith.mulf %71, %67 : vector<16x64xf32>
    %73 = arith.mulf %72, %67 : vector<16x64xf32>
    %74 = arith.addf %67, %73 : vector<16x64xf32>
    %cst_22 = arith.constant 0.797884583 : f32
    %75 = vector.broadcast %cst_22 : f32 to vector<16x64xf32>
    %76 = arith.mulf %75, %74 : vector<16x64xf32>
    %77 = math.tanh %76 : vector<16x64xf32>
    %cst_23 = arith.constant 1.000000e+00 : f32
    %78 = vector.broadcast %cst_23 : f32 to vector<16x64xf32>
    %79 = arith.addf %78, %77 : vector<16x64xf32>
    %80 = arith.mulf %69, %79 : vector<16x64xf32>
    %cst_24 = arith.constant dense<0.000000e+00> : vector<16x32xf32>
    %81 = tpu.matmul %80, %63, %cst_24 {dimension_numbers = #tpu.dot_dimension_numbers<[1], [0], [0], [1], [0, 0, 1, 1], [], []>} : vector<16x64xf32>, vector<64x32xf32>, vector<16x32xf32> -> vector<16x32xf32>
    %82 = vector.extract_strided_slice %2 {offsets = [2, 0], sizes = [1, 32], strides = [1, 1]} : vector<8x128xf32> to vector<1x32xf32>
    %83 = vector.broadcast %82 : vector<1x32xf32> to vector<16x32xf32>
    %84 = arith.addf %81, %83 : vector<16x32xf32>
    %85 = arith.addf %84, %61 : vector<16x32xf32>
    %86 = vector.extract_strided_slice %2 {offsets = [5, 0], sizes = [1, 32], strides = [1, 1]} : vector<8x128xf32> to vector<1x32xf32>
    %87 = vector.extract_strided_slice %2 {offsets = [6, 0], sizes = [1, 32], strides = [1, 1]} : vector<8x128xf32> to vector<1x32xf32>
    %cst_25 = arith.constant dense<0.000000e+00> : vector<16xf32>
    %88 = vector.multi_reduction <add>, %85, %cst_25 [1] : vector<16x32xf32> to vector<16xf32>
    %89 = vector.shape_cast %88 : vector<16xf32> to vector<16x1xf32>
    %cst_26 = arith.constant 3.200000e+01 : f32
    %90 = vector.broadcast %cst_26 : f32 to vector<16x1xf32>
    %91 = arith.divf %89, %90 : vector<16x1xf32>
    %92 = vector.broadcast %91 : vector<16x1xf32> to vector<16x32xf32>
    %93 = arith.subf %85, %92 : vector<16x32xf32>
    %94 = arith.mulf %93, %93 : vector<16x32xf32>
    %cst_27 = arith.constant dense<0.000000e+00> : vector<16xf32>
    %95 = vector.multi_reduction <add>, %94, %cst_27 [1] : vector<16x32xf32> to vector<16xf32>
    %96 = vector.shape_cast %95 : vector<16xf32> to vector<16x1xf32>
    %cst_28 = arith.constant 3.200000e+01 : f32
    %97 = vector.broadcast %cst_28 : f32 to vector<16x1xf32>
    %98 = arith.divf %96, %97 : vector<16x1xf32>
    %99 = vector.broadcast %91 : vector<16x1xf32> to vector<16x32xf32>
    %100 = arith.subf %85, %99 : vector<16x32xf32>
    %cst_29 = arith.constant 9.99999974E-6 : f32
    %101 = vector.broadcast %cst_29 : f32 to vector<16x1xf32>
    %102 = arith.addf %98, %101 : vector<16x1xf32>
    %103 = math.rsqrt %102 : vector<16x1xf32>
    %104 = vector.broadcast %103 : vector<16x1xf32> to vector<16x32xf32>
    %105 = arith.mulf %100, %104 : vector<16x32xf32>
    %106 = vector.broadcast %86 : vector<1x32xf32> to vector<16x32xf32>
    %107 = arith.mulf %105, %106 : vector<16x32xf32>
    %108 = vector.broadcast %87 : vector<1x32xf32> to vector<16x32xf32>
    %109 = arith.addf %107, %108 : vector<16x32xf32>
    %c0_30 = arith.constant 0 : index
    %c0_31 = arith.constant 0 : index
    %110 = vector.load %arg2[%c0_30, %c0_31] : memref<16x32xf32, #tpu.memory_space<vmem>>, vector<16x32xf32>
    tpu.vector_store %arg2[%c0_30, %c0_31], %109 {strides = array<i32>} : memref<16x32xf32, #tpu.memory_space<vmem>>, vector<16x32xf32>,
    return
  }
}

</mosaic_0001>

<llo_original>
// kernel: tpu_custom_call.1
$region0: #{tpu_custom_call.1}
  #allocation0 [shape = 'u32[]', space=smem, size = 0x4, offset = 0x4, fixed_abs, tag = 'smem constant byte address 0x4 - core index']
  #allocation1 [shape = 'u32[144,128]{1,0:T(1,128)}', space=vmem, size = 0x12000, scoped, tag = 'internal scratch']
  %s0 = inlined_call_operand.hbm [shape: f32[16,40], index: 0, kind: input, shape index: {}]
  %s1 = inlined_call_operand.hbm [shape: f32[232,128], index: 1, kind: input, shape index: {}]
  %s2 = inlined_call_operand.hbm [shape: f32[16,32], index: 2, kind: output, shape index: {}]
  %s3 = sld [smem:[#allocation0]]
  $region26: #{tpu_custom_call.1} parent=0
    _
  %s5 = ssub.s32 1, %s3
  %s6 = scalar_select 0, %s5, %s3
  $region1: #{tpu_custom_call.1} parent=0
    #allocation2 [shape = 'u8[8192]{0}', space=vmem, size = 0x2000, scoped, tag = 'input window, operand 0, single buffered']
    #allocation3 [shape = 's32[1]{0}', space=sflag, size = 0x4, scoped, tag = 'scoped memory for tpu_custom_call.1']
    #allocation4 [shape = 's32[1]{0}', space=sflag, size = 0x4, scoped, tag = 'scoped memory for tpu_custom_call.1']
    #allocation5 [shape = 'u8[118784]{0}', space=vmem, size = 0x1d000, scoped, tag = 'input window, operand 1, single buffered']
    #allocation6 [shape = 's32[1]{0}', space=sflag, size = 0x4, scoped, tag = 'scoped memory for tpu_custom_call.1']
    #allocation7 [shape = 'u8[8192]{0}', space=vmem, size = 0x2000, scoped, tag = 'output window, operand 0, single buffered']
    %7 = vsyncpa [#allocation3], 0
    %8 = vsyncpa [#allocation6], 0
    %9 = vsyncpa [#allocation4], 0
    // Predicated region
    $region2: #{tpu_custom_call.1} parent=1 // pred_check
      _
    $region3: #{tpu_custom_call.1} parent=1 // pred_check_branch
      %11 = sbr.rel (0) target = $region5
    $region4: #{tpu_custom_call.1} parent=1 // pred_region
      %s13 = ssub.s32 256, 256
      %14 = vsyncadd [#allocation3], %s13
      %s15 = sshll.u32 [#allocation2], 4
      %s16 = int_to_ptr.vmem [resolvable:$true] %s15
      %21 = dma.hbm_to_vmem [thread:$0]  %s0, 256, %s16, [#allocation3], 128, 128, 8
    $region5: #{tpu_custom_call.1} parent=1 // pred_fallthru
      _
    // Predicated region
    $region6: #{tpu_custom_call.1} parent=1 // pred_check
      _
    $region7: #{tpu_custom_call.1} parent=1 // pred_check_branch
      %23 = sbr.rel (0) target = $region9
    $region8: #{tpu_custom_call.1} parent=1 // pred_region
      %s25 = ssub.s32 3712, 3712
      %26 = vsyncadd [#allocation6], %s25
      %s27 = sshll.u32 [#allocation5], 4
      %s28 = int_to_ptr.vmem [resolvable:$true] %s27
      %33 = dma.hbm_to_vmem [thread:$0]  %s1, 3712, %s28, [#allocation6], 128, 128, 8
    $region9: #{tpu_custom_call.1} parent=1 // pred_fallthru
      _
    // Predicated region
    $region10: #{tpu_custom_call.1} parent=1 // pred_check
      _
    $region11: #{tpu_custom_call.1} parent=1 // pred_check_branch
      %35 = sbr.rel (0) target = $region13
    $region12: #{tpu_custom_call.1} parent=1 // pred_region
      %36 = dma.done [#allocation3], 256
    $region13: #{tpu_custom_call.1} parent=1 // pred_fallthru
      _
    // Predicated region
    $region14: #{tpu_custom_call.1} parent=1 // pred_check
      _
    $region15: #{tpu_custom_call.1} parent=1 // pred_check_branch
      %38 = sbr.rel (0) target = $region17
    $region16: #{tpu_custom_call.1} parent=1 // pred_region
      %39 = dma.done [#allocation6], 3712
    $region17: #{tpu_custom_call.1} parent=1 // pred_fallthru
      _
    %v40 = vld [vmem:[#allocation2] sm:$0xff]
    %v41 = vld [vmem:[#allocation2 + $0x8] sm:$0xff]
    %v42 = vld [vmem:[#allocation5 + $0xe0] sm:$0xff]
    %v43 = vld [vmem:[#allocation5] sm:$0xff]
    %v44 = vld [vmem:[#allocation5 + $0x8] sm:$0xff]
    %v45 = vld [vmem:[#allocation5 + $0x10] sm:$0xff]
    %v46 = vld [vmem:[#allocation5 + $0x18] sm:$0xff]
    %v47 = vld [vmem:[#allocation5 + $0x20] sm:$0xff]
    %v48 = vld [vmem:[#allocation5 + $0x28] sm:$0xff]
    %v49 = vld [vmem:[#allocation5 + $0x30] sm:$0xff]
    %v50 = vld [vmem:[#allocation5 + $0x38] sm:$0xff]
    %v51 = vld [vmem:[#allocation5 + $0x40] sm:$0xff]
    %v52 = vld [vmem:[#allocation5 + $0x48] sm:$0xff]
    %v53 = vld [vmem:[#allocation5 + $0x50] sm:$0xff]
    %v54 = vld [vmem:[#allocation5 + $0x58] sm:$0xff]
    %vm55 = vcmask 326656
    %v57 = vsel %vm55, %v40, 0
    %v60 = vsel %vm55, %v41, 0
    %v63 = vsel %vm55, %v43, 0
    %65 = vmatprep.subr.mxu0 0.0
    %66 = vmatpush1.xpose.msra.mxu0 0.0
    %67 = vmatprep.subr.mxu0 0.0
    %68 = vmatpush1.xpose.msra.mxu0 0.0
    %69 = vmatprep.subr.mxu0 0.0
    %70 = vmatpush1.xpose.msra.mxu0 0.0
    %71 = vmatprep.subr.mxu0 0.0
    %72 = vmatpush1.xpose.msra.mxu0 0.0
    %73 = vmatprep.subr.mxu0 0.0
    %74 = vmatpush1.xpose.msra.mxu0 0.0
    %75 = vmatprep.subr.mxu0 0.0
    %76 = vmatpush1.xpose.msra.mxu0 0.0
    %77 = vmatprep.subr.mxu0 0.0
    %78 = vmatpush1.xpose.msra.mxu0 0.0
    %79 = vmatprep.subr.mxu0 0.0
    %80 = vmatpush1.xpose.msra.mxu0 0.0
    %81 = vmatprep.subr.mxu0 0.0
    %82 = vmatpush1.xpose.msra.mxu0 0.0
    %83 = vmatprep.subr.mxu0 0.0
    %84 = vmatpush1.xpose.msra.mxu0 0.0
    %85 = vmatprep.subr.mxu0 0.0
    %86 = vmatpush1.xpose.msra.mxu0 0.0
    %87 = vmatprep.subr.mxu0 0.0
    %88 = vmatpush1.xpose.msra.mxu0 0.0
    %89 = vmatprep.subr.mxu0 0.0
    %90 = vmatpush1.xpose.msra.mxu0 0.0
    %91 = vmatprep.subr.mxu0 0.0
    %92 = vmatpush1.xpose.msra.mxu0 0.0
    %93 = vmatprep.subr.mxu0 0.0
    %94 = vmatpush1.xpose.msra.mxu0 0.0
    %95 = vmatprep.subr.mxu0 0.0
    %96 = vmatpush1.xpose.msra.mxu0 %v63
    %97 = vmatprep.subr.mxu0 0.0
    %98 = vmatpush2.xpose.msra.mxu0 0.0
    %99 = vmatprep.subr.mxu0 0.0
    %100 = vmatpush2.xpose.msra.mxu0 0.0
    %101 = vmatprep.subr.mxu0 0.0
    %102 = vmatpush2.xpose.msra.mxu0 0.0
    %103 = vmatprep.subr.mxu0 0.0
    %104 = vmatpush2.xpose.msra.mxu0 0.0
    %105 = vmatprep.subr.mxu0 0.0
    %106 = vmatpush2.xpose.msra.mxu0 0.0
    %107 = vmatprep.subr.mxu0 0.0
    %108 = vmatpush2.xpose.msra.mxu0 0.0
    %109 = vmatprep.subr.mxu0 0.0
    %110 = vmatpush2.xpose.msra.mxu0 0.0
    %111 = vmatprep.subr.mxu0 0.0
    %112 = vmatpush2.xpose.msra.mxu0 0.0
    %113 = vmatprep.subr.mxu0 0.0
    %114 = vmatpush2.xpose.msra.mxu0 0.0
    %115 = vmatprep.subr.mxu0 0.0
    %116 = vmatpush2.xpose.msra.mxu0 0.0
    %117 = vmatprep.subr.mxu0 0.0
    %118 = vmatpush2.xpose.msra.mxu0 0.0
    %119 = vmatprep.subr.mxu0 0.0
    %120 = vmatpush2.xpose.msra.mxu0 0.0
    %121 = vmatprep.subr.mxu0 0.0
    %122 = vmatpush2.xpose.msra.mxu0 0.0
    %123 = vmatprep.subr.mxu0 0.0
    %124 = vmatpush2.xpose.msra.mxu0 0.0
    %125 = vmatprep.subr.mxu0 0.0
    %126 = vmatpush2.xpose.msra.mxu0 0.0
    %127 = vmatprep.subr.mxu0 0.0
    %128 = vmatpush2.xpose.msra.mxu0 0.0
    %129 = vmatprep.mubr.f32.mxu0 0.0
    %130 = vmatmul.mubr.f32.gmra.mxu0 %v57
    %v131 = vpop.f32.mrf.mxu0
    %v132 = vadd.f32 0.0, %v131
    %v133 = vpop.f32.mrf.mxu0
    %134 = vmatprep.mubr.f32.mxu0 0.0
    %135 = vmatmul.mubr.f32.gmra.mxu0 %v60
    %v136 = vpop.f32.mrf.mxu0
    %v137 = vadd.f32 0.0, %v136
    %v138 = vpop.f32.mrf.mxu0
    %139 = vdwg.mxu0
    %v141 = vsel %vm55, %v44, 0
    %143 = vmatprep.subr.mxu0 0.0
    %144 = vmatpush1.xpose.msra.mxu0 0.0
    %145 = vmatprep.subr.mxu0 0.0
    %146 = vmatpush1.xpose.msra.mxu0 0.0
    %147 = vmatprep.subr.mxu0 0.0
    %148 = vmatpush1.xpose.msra.mxu0 0.0
    %149 = vmatprep.subr.mxu0 0.0
    %150 = vmatpush1.xpose.msra.mxu0 0.0
    %151 = vmatprep.subr.mxu0 0.0
    %152 = vmatpush1.xpose.msra.mxu0 0.0
    %153 = vmatprep.subr.mxu0 0.0
    %154 = vmatpush1.xpose.msra.mxu0 0.0
    %155 = vmatprep.subr.mxu0 0.0
    %156 = vmatpush1.xpose.msra.mxu0 0.0
    %157 = vmatprep.subr.mxu0 0.0
    %158 = vmatpush1.xpose.msra.mxu0 0.0
    %159 = vmatprep.subr.mxu0 0.0
    %160 = vmatpush1.xpose.msra.mxu0 0.0
    %161 = vmatprep.subr.mxu0 0.0
    %162 = vmatpush1.xpose.msra.mxu0 0.0
    %163 = vmatprep.subr.mxu0 0.0
    %164 = vmatpush1.xpose.msra.mxu0 0.0
    %165 = vmatprep.subr.mxu0 0.0
    %166 = vmatpush1.xpose.msra.mxu0 0.0
    %167 = vmatprep.subr.mxu0 0.0
    %168 = vmatpush1.xpose.msra.mxu0 0.0
    %169 = vmatprep.subr.mxu0 0.0
    %170 = vmatpush1.xpose.msra.mxu0 0.0
    %171 = vmatprep.subr.mxu0 0.0
    %172 = vmatpush1.xpose.msra.mxu0 0.0
    %173 = vmatprep.subr.mxu0 0.0
    %174 = vmatpush1.xpose.msra.mxu0 %v141
    %175 = vmatprep.subr.mxu0 0.0
    %176 = vmatpush2.xpose.msra.mxu0 0.0
    %177 = vmatprep.subr.mxu0 0.0
    %178 = vmatpush2.xpose.msra.mxu0 0.0
    %179 = vmatprep.subr.mxu0 0.0
    %180 = vmatpush2.xpose.msra.mxu0 0.0
    %181 = vmatprep.subr.mxu0 0.0
    %182 = vmatpush2.xpose.msra.mxu0 0.0
    %183 = vmatprep.subr.mxu0 0.0
    %184 = vmatpush2.xpose.msra.mxu0 0.0
    %185 = vmatprep.subr.mxu0 0.0
    %186 = vmatpush2.xpose.msra.mxu0 0.0
    %187 = vmatprep.subr.mxu0 0.0
    %188 = vmatpush2.xpose.msra.mxu0 0.0
    %189 = vmatprep.subr.mxu0 0.0
    %190 = vmatpush2.xpose.msra.mxu0 0.0
    %191 = vmatprep.subr.mxu0 0.0
    %192 = vmatpush2.xpose.msra.mxu0 0.0
    %193 = vmatprep.subr.mxu0 0.0
    %194 = vmatpush2.xpose.msra.mxu0 0.0
    %195 = vmatprep.subr.mxu0 0.0
    %196 = vmatpush2.xpose.msra.mxu0 0.0
    %197 = vmatprep.subr.mxu0 0.0
    %198 = vmatpush2.xpose.msra.mxu0 0.0
    %199 = vmatprep.subr.mxu0 0.0
    %200 = vmatpush2.xpose.msra.mxu0 0.0
    %201 = vmatprep.subr.mxu0 0.0
    %202 = vmatpush2.xpose.msra.mxu0 0.0
    %203 = vmatprep.subr.mxu0 0.0
    %204 = vmatpush2.xpose.msra.mxu0 0.0
    %205 = vmatprep.subr.mxu0 0.0
    %206 = vmatpush2.xpose.msra.mxu0 0.0
    %207 = vmatprep.mubr.f32.mxu0 0.0
    %208 = vmatmul.mubr.f32.gmra.mxu0 %v57
    %v209 = vpop.f32.mrf.mxu0
    %v210 = vadd.f32 0.0, %v209
    %v211 = vpop.f32.mrf.mxu0
    %212 = vmatprep.mubr.f32.mxu0 0.0
    %213 = vmatmul.mubr.f32.gmra.mxu0 %v60
    %v214 = vpop.f32.mrf.mxu0
    %v215 = vadd.f32 0.0, %v214
    %v216 = vpop.f32.mrf.mxu0
    %217 = vdwg.mxu0
    %v219 = vsel %vm55, %v45, 0
    %221 = vmatprep.subr.mxu0 0.0
    %222 = vmatpush1.xpose.msra.mxu0 0.0
    %223 = vmatprep.subr.mxu0 0.0
    %224 = vmatpush1.xpose.msra.mxu0 0.0
    %225 = vmatprep.subr.mxu0 0.0
    %226 = vmatpush1.xpose.msra.mxu0 0.0
    %227 = vmatprep.subr.mxu0 0.0
    %228 = vmatpush1.xpose.msra.mxu0 0.0
    %229 = vmatprep.subr.mxu0 0.0
    %230 = vmatpush1.xpose.msra.mxu0 0.0
    %231 = vmatprep.subr.mxu0 0.0
    %232 = vmatpush1.xpose.msra.mxu0 0.0
    %233 = vmatprep.subr.mxu0 0.0
    %234 = vmatpush1.xpose.msra.mxu0 0.0
    %235 = vmatprep.subr.mxu0 0.0
    %236 = vmatpush1.xpose.msra.mxu0 0.0
    %237 = vmatprep.subr.mxu0 0.0
    %238 = vmatpush1.xpose.msra.mxu0 0.0
    %239 = vmatprep.subr.mxu0 0.0
    %240 = vmatpush1.xpose.msra.mxu0 0.0
    %241 = vmatprep.subr.mxu0 0.0
    %242 = vmatpush1.xpose.msra.mxu0 0.0
    %243 = vmatprep.subr.mxu0 0.0
    %244 = vmatpush1.xpose.msra.mxu0 0.0
    %245 = vmatprep.subr.mxu0 0.0
    %246 = vmatpush1.xpose.msra.mxu0 0.0
    %247 = vmatprep.subr.mxu0 0.0
    %248 = vmatpush1.xpose.msra.mxu0 0.0
    %249 = vmatprep.subr.mxu0 0.0
    %250 = vmatpush1.xpose.msra.mxu0 0.0
    %251 = vmatprep.subr.mxu0 0.0
    %252 = vmatpush1.xpose.msra.mxu0 %v219
    %253 = vmatprep.subr.mxu0 0.0
    %254 = vmatpush2.xpose.msra.mxu0 0.0
    %255 = vmatprep.subr.mxu0 0.0
    %256 = vmatpush2.xpose.msra.mxu0 0.0
    %257 = vmatprep.subr.mxu0 0.0
    %258 = vmatpush2.xpose.msra.mxu0 0.0
    %259 = vmatprep.subr.mxu0 0.0
    %260 = vmatpush2.xpose.msra.mxu0 0.0
    %261 = vmatprep.subr.mxu0 0.0
    %262 = vmatpush2.xpose.msra.mxu0 0.0
    %263 = vmatprep.subr.mxu0 0.0
    %264 = vmatpush2.xpose.msra.mxu0 0.0
    %265 = vmatprep.subr.mxu0 0.0
    %266 = vmatpush2.xpose.msra.mxu0 0.0
    %267 = vmatprep.subr.mxu0 0.0
    %268 = vmatpush2.xpose.msra.mxu0 0.0
    %269 = vmatprep.subr.mxu0 0.0
    %270 = vmatpush2.xpose.msra.mxu0 0.0
    %271 = vmatprep.subr.mxu0 0.0
    %272 = vmatpush2.xpose.msra.mxu0 0.0
    %273 = vmatprep.subr.mxu0 0.0
    %274 = vmatpush2.xpose.msra.mxu0 0.0
    %275 = vmatprep.subr.mxu0 0.0
    %276 = vmatpush2.xpose.msra.mxu0 0.0
    %277 = vmatprep.subr.mxu0 0.0
    %278 = vmatpush2.xpose.msra.mxu0 0.0
    %279 = vmatprep.subr.mxu0 0.0
    %280 = vmatpush2.xpose.msra.mxu0 0.0
    %281 = vmatprep.subr.mxu0 0.0
    %282 = vmatpush2.xpose.msra.mxu0 0.0
    %283 = vmatprep.subr.mxu0 0.0
    %284 = vmatpush2.xpose.msra.mxu0 0.0
    %285 = vmatprep.mubr.f32.mxu0 0.0
    %286 = vmatmul.mubr.f32.gmra.mxu0 %v57
    %v287 = vpop.f32.mrf.mxu0
    %v288 = vadd.f32 0.0, %v287
    %v289 = vpop.f32.mrf.mxu0
    %290 = vmatprep.mubr.f32.mxu0 0.0
    %291 = vmatmul.mubr.f32.gmra.mxu0 %v60
    %v292 = vpop.f32.mrf.mxu0
    %v293 = vadd.f32 0.0, %v292
    %v294 = vpop.f32.mrf.mxu0
    %295 = vdwg.mxu0
    %v297 = vsel %vm55, %v46, 0
    %299 = vmatprep.subr.mxu0 0.0
    %300 = vmatpush1.xpose.msra.mxu0 0.0
    %301 = vmatprep.subr.mxu0 0.0
    %302 = vmatpush1.xpose.msra.mxu0 0.0
    %303 = vmatprep.subr.mxu0 0.0
    %304 = vmatpush1.xpose.msra.mxu0 0.0
    %305 = vmatprep.subr.mxu0 0.0
    %306 = vmatpush1.xpose.msra.mxu0 0.0
    %307 = vmatprep.subr.mxu0 0.0
    %308 = vmatpush1.xpose.msra.mxu0 0.0
    %309 = vmatprep.subr.mxu0 0.0
    %310 = vmatpush1.xpose.msra.mxu0 0.0
    %311 = vmatprep.subr.mxu0 0.0
    %312 = vmatpush1.xpose.msra.mxu0 0.0
    %313 = vmatprep.subr.mxu0 0.0
    %314 = vmatpush1.xpose.msra.mxu0 0.0
    %315 = vmatprep.subr.mxu0 0.0
    %316 = vmatpush1.xpose.msra.mxu0 0.0
    %317 = vmatprep.subr.mxu0 0.0
    %318 = vmatpush1.xpose.msra.mxu0 0.0
    %319 = vmatprep.subr.mxu0 0.0
    %320 = vmatpush1.xpose.msra.mxu0 0.0
    %321 = vmatprep.subr.mxu0 0.0
    %322 = vmatpush1.xpose.msra.mxu0 0.0
    %323 = vmatprep.subr.mxu0 0.0
    %324 = vmatpush1.xpose.msra.mxu0 0.0
    %325 = vmatprep.subr.mxu0 0.0
    %326 = vmatpush1.xpose.msra.mxu0 0.0
    %327 = vmatprep.subr.mxu0 0.0
    %328 = vmatpush1.xpose.msra.mxu0 0.0
    %329 = vmatprep.subr.mxu0 0.0
    %330 = vmatpush1.xpose.msra.mxu0 %v297
    %331 = vmatprep.subr.mxu0 0.0
    %332 = vmatpush2.xpose.msra.mxu0 0.0
    %333 = vmatprep.subr.mxu0 0.0
    %334 = vmatpush2.xpose.msra.mxu0 0.0
    %335 = vmatprep.subr.mxu0 0.0
    %336 = vmatpush2.xpose.msra.mxu0 0.0
    %337 = vmatprep.subr.mxu0 0.0
    %338 = vmatpush2.xpose.msra.mxu0 0.0
    %339 = vmatprep.subr.mxu0 0.0
    %340 = vmatpush2.xpose.msra.mxu0 0.0
    %341 = vmatprep.subr.mxu0 0.0
    %342 = vmatpush2.xpose.msra.mxu0 0.0
    %343 = vmatprep.subr.mxu0 0.0
    %344 = vmatpush2.xpose.msra.mxu0 0.0
    %345 = vmatprep.subr.mxu0 0.0
    %346 = vmatpush2.xpose.msra.mxu0 0.0
    %347 = vmatprep.subr.mxu0 0.0
    %348 = vmatpush2.xpose.msra.mxu0 0.0
    %349 = vmatprep.subr.mxu0 0.0
    %350 = vmatpush2.xpose.msra.mxu0 0.0
    %351 = vmatprep.subr.mxu0 0.0
    %352 = vmatpush2.xpose.msra.mxu0 0.0
    %353 = vmatprep.subr.mxu0 0.0
    %354 = vmatpush2.xpose.msra.mxu0 0.0
    %355 = vmatprep.subr.mxu0 0.0
    %356 = vmatpush2.xpose.msra.mxu0 0.0
    %357 = vmatprep.subr.mxu0 0.0
    %358 = vmatpush2.xpose.msra.mxu0 0.0
    %359 = vmatprep.subr.mxu0 0.0
    %360 = vmatpush2.xpose.msra.mxu0 0.0
    %361 = vmatprep.subr.mxu0 0.0
    %362 = vmatpush2.xpose.msra.mxu0 0.0
    %363 = vmatprep.mubr.f32.mxu0 0.0
    %364 = vmatmul.mubr.f32.gmra.mxu0 %v57
    %v365 = vpop.f32.mrf.mxu0
    %v366 = vadd.f32 0.0, %v365
    %v367 = vpop.f32.mrf.mxu0
    %368 = vmatprep.mubr.f32.mxu0 0.0
    %369 = vmatmul.mubr.f32.gmra.mxu0 %v60
    %v370 = vpop.f32.mrf.mxu0
    %v371 = vadd.f32 0.0, %v370
    %v372 = vpop.f32.mrf.mxu0
    %373 = vdwg.mxu0
    %v375 = vsel %vm55, %v47, 0
    %377 = vmatprep.subr.mxu0 0.0
    %378 = vmatpush1.xpose.msra.mxu0 0.0
    %379 = vmatprep.subr.mxu0 0.0
    %380 = vmatpush1.xpose.msra.mxu0 0.0
    %381 = vmatprep.subr.mxu0 0.0
    %382 = vmatpush1.xpose.msra.mxu0 0.0
    %383 = vmatprep.subr.mxu0 0.0
    %384 = vmatpush1.xpose.msra.mxu0 0.0
    %385 = vmatprep.subr.mxu0 0.0
    %386 = vmatpush1.xpose.msra.mxu0 0.0
    %387 = vmatprep.subr.mxu0 0.0
    %388 = vmatpush1.xpose.msra.mxu0 0.0
    %389 = vmatprep.subr.mxu0 0.0
    %390 = vmatpush1.xpose.msra.mxu0 0.0
    %391 = vmatprep.subr.mxu0 0.0
    %392 = vmatpush1.xpose.msra.mxu0 0.0
    %393 = vmatprep.subr.mxu0 0.0
    %394 = vmatpush1.xpose.msra.mxu0 0.0
    %395 = vmatprep.subr.mxu0 0.0
    %396 = vmatpush1.xpose.msra.mxu0 0.0
    %397 = vmatprep.subr.mxu0 0.0
    %398 = vmatpush1.xpose.msra.mxu0 0.0
    %399 = vmatprep.subr.mxu0 0.0
    %400 = vmatpush1.xpose.msra.mxu0 0.0
    %401 = vmatprep.subr.mxu0 0.0
    %402 = vmatpush1.xpose.msra.mxu0 0.0
    %403 = vmatprep.subr.mxu0 0.0
    %404 = vmatpush1.xpose.msra.mxu0 0.0
    %405 = vmatprep.subr.mxu0 0.0
    %406 = vmatpush1.xpose.msra.mxu0 0.0
    %407 = vmatprep.subr.mxu0 0.0
    %408 = vmatpush1.xpose.msra.mxu0 %v375
    %409 = vmatprep.subr.mxu0 0.0
    %410 = vmatpush2.xpose.msra.mxu0 0.0
    %411 = vmatprep.subr.mxu0 0.0
    %412 = vmatpush2.xpose.msra.mxu0 0.0
    %413 = vmatprep.subr.mxu0 0.0
    %414 = vmatpush2.xpose.msra.mxu0 0.0
    %415 = vmatprep.subr.mxu0 0.0
    %416 = vmatpush2.xpose.msra.mxu0 0.0
    %417 = vmatprep.subr.mxu0 0.0
    %418 = vmatpush2.xpose.msra.mxu0 0.0
    %419 = vmatprep.subr.mxu0 0.0
    %420 = vmatpush2.xpose.msra.mxu0 0.0
    %421 = vmatprep.subr.mxu0 0.0
    %422 = vmatpush2.xpose.msra.mxu0 0.0
    %423 = vmatprep.subr.mxu0 0.0
    %424 = vmatpush2.xpose.msra.mxu0 0.0
    %425 = vmatprep.subr.mxu0 0.0
    %426 = vmatpush2.xpose.msra.mxu0 0.0
    %427 = vmatprep.subr.mxu0 0.0
    %428 = vmatpush2.xpose.msra.mxu0 0.0
    %429 = vmatprep.subr.mxu0 0.0
    %430 = vmatpush2.xpose.msra.mxu0 0.0
    %431 = vmatprep.subr.mxu0 0.0
    %432 = vmatpush2.xpose.msra.mxu0 0.0
    %433 = vmatprep.subr.mxu0 0.0
    %434 = vmatpush2.xpose.msra.mxu0 0.0
    %435 = vmatprep.subr.mxu0 0.0
    %436 = vmatpush2.xpose.msra.mxu0 0.0
    %437 = vmatprep.subr.mxu0 0.0
    %438 = vmatpush2.xpose.msra.mxu0 0.0
    %439 = vmatprep.subr.mxu0 0.0
    %440 = vmatpush2.xpose.msra.mxu0 0.0
    %441 = vmatprep.mubr.f32.mxu0 0.0
    %442 = vmatmul.mubr.f32.gmra.mxu0 %v57
    %v443 = vpop.f32.mrf.mxu0
    %v444 = vadd.f32 0.0, %v443
    %v445 = vpop.f32.mrf.mxu0
    %446 = vmatprep.mubr.f32.mxu0 0.0
    %447 = vmatmul.mubr.f32.gmra.mxu0 %v60
    %v448 = vpop.f32.mrf.mxu0
    %v449 = vadd.f32 0.0, %v448
    %v450 = vpop.f32.mrf.mxu0
    %451 = vdwg.mxu0
    %v453 = vsel %vm55, %v48, 0
    %455 = vmatprep.subr.mxu0 0.0
    %456 = vmatpush1.xpose.msra.mxu0 0.0
    %457 = vmatprep.subr.mxu0 0.0
    %458 = vmatpush1.xpose.msra.mxu0 0.0
    %459 = vmatprep.subr.mxu0 0.0
    %460 = vmatpush1.xpose.msra.mxu0 0.0
    %461 = vmatprep.subr.mxu0 0.0
    %462 = vmatpush1.xpose.msra.mxu0 0.0
    %463 = vmatprep.subr.mxu0 0.0
    %464 = vmatpush1.xpose.msra.mxu0 0.0
    %465 = vmatprep.subr.mxu0 0.0
    %466 = vmatpush1.xpose.msra.mxu0 0.0
    %467 = vmatprep.subr.mxu0 0.0
    %468 = vmatpush1.xpose.msra.mxu0 0.0
    %469 = vmatprep.subr.mxu0 0.0
    %470 = vmatpush1.xpose.msra.mxu0 0.0
    %471 = vmatprep.subr.mxu0 0.0
    %472 = vmatpush1.xpose.msra.mxu0 0.0
    %473 = vmatprep.subr.mxu0 0.0
    %474 = vmatpush1.xpose.msra.mxu0 0.0
    %475 = vmatprep.subr.mxu0 0.0
    %476 = vmatpush1.xpose.msra.mxu0 0.0
    %477 = vmatprep.subr.mxu0 0.0
    %478 = vmatpush1.xpose.msra.mxu0 0.0
    %479 = vmatprep.subr.mxu0 0.0
    %480 = vmatpush1.xpose.msra.mxu0 0.0
    %481 = vmatprep.subr.mxu0 0.0
    %482 = vmatpush1.xpose.msra.mxu0 0.0
    %483 = vmatprep.subr.mxu0 0.0
    %484 = vmatpush1.xpose.msra.mxu0 0.0
    %485 = vmatprep.subr.mxu0 0.0
    %486 = vmatpush1.xpose.msra.mxu0 %v453
    %487 = vmatprep.subr.mxu0 0.0
    %488 = vmatpush2.xpose.msra.mxu0 0.0
    %489 = vmatprep.subr.mxu0 0.0
    %490 = vmatpush2.xpose.msra.mxu0 0.0
    %491 = vmatprep.subr.mxu0 0.0
    %492 = vmatpush2.xpose.msra.mxu0 0.0
    %493 = vmatprep.subr.mxu0 0.0
    %494 = vmatpush2.xpose.msra.mxu0 0.0
    %495 = vmatprep.subr.mxu0 0.0
    %496 = vmatpush2.xpose.msra.mxu0 0.0
    %497 = vmatprep.subr.mxu0 0.0
    %498 = vmatpush2.xpose.msra.mxu0 0.0
    %499 = vmatprep.subr.mxu0 0.0
    %500 = vmatpush2.xpose.msra.mxu0 0.0
    %501 = vmatprep.subr.mxu0 0.0
    %502 = vmatpush2.xpose.msra.mxu0 0.0
    %503 = vmatprep.subr.mxu0 0.0
    %504 = vmatpush2.xpose.msra.mxu0 0.0
    %505 = vmatprep.subr.mxu0 0.0
    %506 = vmatpush2.xpose.msra.mxu0 0.0
    %507 = vmatprep.subr.mxu0 0.0
    %508 = vmatpush2.xpose.msra.mxu0 0.0
    %509 = vmatprep.subr.mxu0 0.0
    %510 = vmatpush2.xpose.msra.mxu0 0.0
    %511 = vmatprep.subr.mxu0 0.0
    %512 = vmatpush2.xpose.msra.mxu0 0.0
    %513 = vmatprep.subr.mxu0 0.0
    %514 = vmatpush2.xpose.msra.mxu0 0.0
    %515 = vmatprep.subr.mxu0 0.0
    %516 = vmatpush2.xpose.msra.mxu0 0.0
    %517 = vmatprep.subr.mxu0 0.0
    %518 = vmatpush2.xpose.msra.mxu0 0.0
    %519 = vmatprep.mubr.f32.mxu0 0.0
    %520 = vmatmul.mubr.f32.gmra.mxu0 %v57
    %v521 = vpop.f32.mrf.mxu0
    %v522 = vadd.f32 0.0, %v521
    %v523 = vpop.f32.mrf.mxu0
    %524 = vmatprep.mubr.f32.mxu0 0.0
    %525 = vmatmul.mubr.f32.gmra.mxu0 %v60
    %v526 = vpop.f32.mrf.mxu0
    %v527 = vadd.f32 0.0, %v526
    %v528 = vpop.f32.mrf.mxu0
    %529 = vdwg.mxu0
    %v531 = vsel %vm55, %v49, 0
    %533 = vmatprep.subr.mxu0 0.0
    %534 = vmatpush1.xpose.msra.mxu0 0.0
    %535 = vmatprep.subr.mxu0 0.0
    %536 = vmatpush1.xpose.msra.mxu0 0.0
    %537 = vmatprep.subr.mxu0 0.0
    %538 = vmatpush1.xpose.msra.mxu0 0.0
    %539 = vmatprep.subr.mxu0 0.0
    %540 = vmatpush1.xpose.msra.mxu0 0.0
    %541 = vmatprep.subr.mxu0 0.0
    %542 = vmatpush1.xpose.msra.mxu0 0.0
    %543 = vmatprep.subr.mxu0 0.0
    %544 = vmatpush1.xpose.msra.mxu0 0.0
    %545 = vmatprep.subr.mxu0 0.0
    %546 = vmatpush1.xpose.msra.mxu0 0.0
    %547 = vmatprep.subr.mxu0 0.0
    %548 = vmatpush1.xpose.msra.mxu0 0.0
    %549 = vmatprep.subr.mxu0 0.0
    %550 = vmatpush1.xpose.msra.mxu0 0.0
    %551 = vmatprep.subr.mxu0 0.0
    %552 = vmatpush1.xpose.msra.mxu0 0.0
    %553 = vmatprep.subr.mxu0 0.0
    %554 = vmatpush1.xpose.msra.mxu0 0.0
    %555 = vmatprep.subr.mxu0 0.0
    %556 = vmatpush1.xpose.msra.mxu0 0.0
    %557 = vmatprep.subr.mxu0 0.0
    %558 = vmatpush1.xpose.msra.mxu0 0.0
    %559 = vmatprep.subr.mxu0 0.0
    %560 = vmatpush1.xpose.msra.mxu0 0.0
    %561 = vmatprep.subr.mxu0 0.0
    %562 = vmatpush1.xpose.msra.mxu0 0.0
    %563 = vmatprep.subr.mxu0 0.0
    %564 = vmatpush1.xpose.msra.mxu0 %v531
    %565 = vmatprep.subr.mxu0 0.0
    %566 = vmatpush2.xpose.msra.mxu0 0.0
    %567 = vmatprep.subr.mxu0 0.0
    %568 = vmatpush2.xpose.msra.mxu0 0.0
    %569 = vmatprep.subr.mxu0 0.0
    %570 = vmatpush2.xpose.msra.mxu0 0.0
    %571 = vmatprep.subr.mxu0 0.0
    %572 = vmatpush2.xpose.msra.mxu0 0.0
    %573 = vmatprep.subr.mxu0 0.0
    %574 = vmatpush2.xpose.msra.mxu0 0.0
    %575 = vmatprep.subr.mxu0 0.0
    %576 = vmatpush2.xpose.msra.mxu0 0.0
    %577 = vmatprep.subr.mxu0 0.0
    %578 = vmatpush2.xpose.msra.mxu0 0.0
    %579 = vmatprep.subr.mxu0 0.0
    %580 = vmatpush2.xpose.msra.mxu0 0.0
    %581 = vmatprep.subr.mxu0 0.0
    %582 = vmatpush2.xpose.msra.mxu0 0.0
    %583 = vmatprep.subr.mxu0 0.0
    %584 = vmatpush2.xpose.msra.mxu0 0.0
    %585 = vmatprep.subr.mxu0 0.0
    %586 = vmatpush2.xpose.msra.mxu0 0.0
    %587 = vmatprep.subr.mxu0 0.0
    %588 = vmatpush2.xpose.msra.mxu0 0.0
    %589 = vmatprep.subr.mxu0 0.0
    %590 = vmatpush2.xpose.msra.mxu0 0.0
    %591 = vmatprep.subr.mxu0 0.0
    %592 = vmatpush2.xpose.msra.mxu0 0.0
    %593 = vmatprep.subr.mxu0 0.0
    %594 = vmatpush2.xpose.msra.mxu0 0.0
    %595 = vmatprep.subr.mxu0 0.0
    %596 = vmatpush2.xpose.msra.mxu0 0.0
    %597 = vmatprep.mubr.f32.mxu0 0.0
    %598 = vmatmul.mubr.f32.gmra.mxu0 %v57
    %v599 = vpop.f32.mrf.mxu0
    %v600 = vadd.f32 0.0, %v599
    %v601 = vpop.f32.mrf.mxu0
    %602 = vmatprep.mubr.f32.mxu0 0.0
    %603 = vmatmul.mubr.f32.gmra.mxu0 %v60
    %v604 = vpop.f32.mrf.mxu0
    %v605 = vadd.f32 0.0, %v604
    %v606 = vpop.f32.mrf.mxu0
    %607 = vdwg.mxu0
    %v609 = vsel %vm55, %v50, 0
    %611 = vmatprep.subr.mxu0 0.0
    %612 = vmatpush1.xpose.msra.mxu0 0.0
    %613 = vmatprep.subr.mxu0 0.0
    %614 = vmatpush1.xpose.msra.mxu0 0.0
    %615 = vmatprep.subr.mxu0 0.0
    %616 = vmatpush1.xpose.msra.mxu0 0.0
    %617 = vmatprep.subr.mxu0 0.0
    %618 = vmatpush1.xpose.msra.mxu0 0.0
    %619 = vmatprep.subr.mxu0 0.0
    %620 = vmatpush1.xpose.msra.mxu0 0.0
    %621 = vmatprep.subr.mxu0 0.0
    %622 = vmatpush1.xpose.msra.mxu0 0.0
    %623 = vmatprep.subr.mxu0 0.0
    %624 = vmatpush1.xpose.msra.mxu0 0.0
    %625 = vmatprep.subr.mxu0 0.0
    %626 = vmatpush1.xpose.msra.mxu0 0.0
    %627 = vmatprep.subr.mxu0 0.0
    %628 = vmatpush1.xpose.msra.mxu0 0.0
    %629 = vmatprep.subr.mxu0 0.0
    %630 = vmatpush1.xpose.msra.mxu0 0.0
    %631 = vmatprep.subr.mxu0 0.0
    %632 = vmatpush1.xpose.msra.mxu0 0.0
    %633 = vmatprep.subr.mxu0 0.0
    %634 = vmatpush1.xpose.msra.mxu0 0.0
    %635 = vmatprep.subr.mxu0 0.0
    %636 = vmatpush1.xpose.msra.mxu0 0.0
    %637 = vmatprep.subr.mxu0 0.0
    %638 = vmatpush1.xpose.msra.mxu0 0.0
    %639 = vmatprep.subr.mxu0 0.0
    %640 = vmatpush1.xpose.msra.mxu0 0.0
    %641 = vmatprep.subr.mxu0 0.0
    %642 = vmatpush1.xpose.msra.mxu0 %v609
    %643 = vmatprep.subr.mxu0 0.0
    %644 = vmatpush2.xpose.msra.mxu0 0.0
    %645 = vmatprep.subr.mxu0 0.0
    %646 = vmatpush2.xpose.msra.mxu0 0.0
    %647 = vmatprep.subr.mxu0 0.0
    %648 = vmatpush2.xpose.msra.mxu0 0.0
    %649 = vmatprep.subr.mxu0 0.0
    %650 = vmatpush2.xpose.msra.mxu0 0.0
    %651 = vmatprep.subr.mxu0 0.0
    %652 = vmatpush2.xpose.msra.mxu0 0.0
    %653 = vmatprep.subr.mxu0 0.0
    %654 = vmatpush2.xpose.msra.mxu0 0.0
    %655 = vmatprep.subr.mxu0 0.0
    %656 = vmatpush2.xpose.msra.mxu0 0.0
    %657 = vmatprep.subr.mxu0 0.0
    %658 = vmatpush2.xpose.msra.mxu0 0.0
    %659 = vmatprep.subr.mxu0 0.0
    %660 = vmatpush2.xpose.msra.mxu0 0.0
    %661 = vmatprep.subr.mxu0 0.0
    %662 = vmatpush2.xpose.msra.mxu0 0.0
    %663 = vmatprep.subr.mxu0 0.0
    %664 = vmatpush2.xpose.msra.mxu0 0.0
    %665 = vmatprep.subr.mxu0 0.0
    %666 = vmatpush2.xpose.msra.mxu0 0.0
    %667 = vmatprep.subr.mxu0 0.0
    %668 = vmatpush2.xpose.msra.mxu0 0.0
    %669 = vmatprep.subr.mxu0 0.0
    %670 = vmatpush2.xpose.msra.mxu0 0.0
    %671 = vmatprep.subr.mxu0 0.0
    %672 = vmatpush2.xpose.msra.mxu0 0.0
    %673 = vmatprep.subr.mxu0 0.0
    %674 = vmatpush2.xpose.msra.mxu0 0.0
    %675 = vmatprep.mubr.f32.mxu0 0.0
    %676 = vmatmul.mubr.f32.gmra.mxu0 %v57
    %v677 = vpop.f32.mrf.mxu0
    %v678 = vadd.f32 0.0, %v677
    %v679 = vpop.f32.mrf.mxu0
    %680 = vmatprep.mubr.f32.mxu0 0.0
    %681 = vmatmul.mubr.f32.gmra.mxu0 %v60
    %v682 = vpop.f32.mrf.mxu0
    %v683 = vadd.f32 0.0, %v682
    %v684 = vpop.f32.mrf.mxu0
    %685 = vdwg.mxu0
    %v687 = vsel %vm55, %v51, 0
    %689 = vmatprep.subr.mxu0 0.0
    %690 = vmatpush1.xpose.msra.mxu0 0.0
    %691 = vmatprep.subr.mxu0 0.0
    %692 = vmatpush1.xpose.msra.mxu0 0.0
    %693 = vmatprep.subr.mxu0 0.0
    %694 = vmatpush1.xpose.msra.mxu0 0.0
    %695 = vmatprep.subr.mxu0 0.0
    %696 = vmatpush1.xpose.msra.mxu0 0.0
    %697 = vmatprep.subr.mxu0 0.0
    %698 = vmatpush1.xpose.msra.mxu0 0.0
    %699 = vmatprep.subr.mxu0 0.0
    %700 = vmatpush1.xpose.msra.mxu0 0.0
    %701 = vmatprep.subr.mxu0 0.0
    %702 = vmatpush1.xpose.msra.mxu0 0.0
    %703 = vmatprep.subr.mxu0 0.0
    %704 = vmatpush1.xpose.msra.mxu0 0.0
    %705 = vmatprep.subr.mxu0 0.0
    %706 = vmatpush1.xpose.msra.mxu0 0.0
    %707 = vmatprep.subr.mxu0 0.0
    %708 = vmatpush1.xpose.msra.mxu0 0.0
    %709 = vmatprep.subr.mxu0 0.0
    %710 = vmatpush1.xpose.msra.mxu0 0.0
    %711 = vmatprep.subr.mxu0 0.0
    %712 = vmatpush1.xpose.msra.mxu0 0.0
    %713 = vmatprep.subr.mxu0 0.0
    %714 = vmatpush1.xpose.msra.mxu0 0.0
    %715 = vmatprep.subr.mxu0 0.0
    %716 = vmatpush1.xpose.msra.mxu0 0.0
    %717 = vmatprep.subr.mxu0 0.0
    %718 = vmatpush1.xpose.msra.mxu0 0.0
    %719 = vmatprep.subr.mxu0 0.0
    %720 = vmatpush1.xpose.msra.mxu0 %v687
    %721 = vmatprep.subr.mxu0 0.0
    %722 = vmatpush2.xpose.msra.mxu0 0.0
    %723 = vmatprep.subr.mxu0 0.0
    %724 = vmatpush2.xpose.msra.mxu0 0.0
    %725 = vmatprep.subr.mxu0 0.0
    %726 = vmatpush2.xpose.msra.mxu0 0.0
    %727 = vmatprep.subr.mxu0 0.0
    %728 = vmatpush2.xpose.msra.mxu0 0.0
    %729 = vmatprep.subr.mxu0 0.0
    %730 = vmatpush2.xpose.msra.mxu0 0.0
    %731 = vmatprep.subr.mxu0 0.0
    %732 = vmatpush2.xpose.msra.mxu0 0.0
    %733 = vmatprep.subr.mxu0 0.0
    %734 = vmatpush2.xpose.msra.mxu0 0.0
    %735 = vmatprep.subr.mxu0 0.0
    %736 = vmatpush2.xpose.msra.mxu0 0.0
    %737 = vmatprep.subr.mxu0 0.0
    %738 = vmatpush2.xpose.msra.mxu0 0.0
    %739 = vmatprep.subr.mxu0 0.0
    %740 = vmatpush2.xpose.msra.mxu0 0.0
    %741 = vmatprep.subr.mxu0 0.0
    %742 = vmatpush2.xpose.msra.mxu0 0.0
    %743 = vmatprep.subr.mxu0 0.0
    %744 = vmatpush2.xpose.msra.mxu0 0.0
    %745 = vmatprep.subr.mxu0 0.0
    %746 = vmatpush2.xpose.msra.mxu0 0.0
    %747 = vmatprep.subr.mxu0 0.0
    %748 = vmatpush2.xpose.msra.mxu0 0.0
    %749 = vmatprep.subr.mxu0 0.0
    %750 = vmatpush2.xpose.msra.mxu0 0.0
    %751 = vmatprep.subr.mxu0 0.0
    %752 = vmatpush2.xpose.msra.mxu0 0.0
    %753 = vmatprep.mubr.f32.mxu0 0.0
    %754 = vmatmul.mubr.f32.gmra.mxu0 %v57
    %v755 = vpop.f32.mrf.mxu0
    %v756 = vadd.f32 0.0, %v755
    %v757 = vpop.f32.mrf.mxu0
    %758 = vmatprep.mubr.f32.mxu0 0.0
    %759 = vmatmul.mubr.f32.gmra.mxu0 %v60
    %v760 = vpop.f32.mrf.mxu0
    %v761 = vadd.f32 0.0, %v760
    %v762 = vpop.f32.mrf.mxu0
    %763 = vdwg.mxu0
    %v765 = vsel %vm55, %v52, 0
    %767 = vmatprep.subr.mxu0 0.0
    %768 = vmatpush1.xpose.msra.mxu0 0.0
    %769 = vmatprep.subr.mxu0 0.0
    %770 = vmatpush1.xpose.msra.mxu0 0.0
    %771 = vmatprep.subr.mxu0 0.0
    %772 = vmatpush1.xpose.msra.mxu0 0.0
    %773 = vmatprep.subr.mxu0 0.0
    %774 = vmatpush1.xpose.msra.mxu0 0.0
    %775 = vmatprep.subr.mxu0 0.0
    %776 = vmatpush1.xpose.msra.mxu0 0.0
    %777 = vmatprep.subr.mxu0 0.0
    %778 = vmatpush1.xpose.msra.mxu0 0.0
    %779 = vmatprep.subr.mxu0 0.0
    %780 = vmatpush1.xpose.msra.mxu0 0.0
    %781 = vmatprep.subr.mxu0 0.0
    %782 = vmatpush1.xpose.msra.mxu0 0.0
    %783 = vmatprep.subr.mxu0 0.0
    %784 = vmatpush1.xpose.msra.mxu0 0.0
    %785 = vmatprep.subr.mxu0 0.0
    %786 = vmatpush1.xpose.msra.mxu0 0.0
    %787 = vmatprep.subr.mxu0 0.0
    %788 = vmatpush1.xpose.msra.mxu0 0.0
    %789 = vmatprep.subr.mxu0 0.0
    %790 = vmatpush1.xpose.msra.mxu0 0.0
    %791 = vmatprep.subr.mxu0 0.0
    %792 = vmatpush1.xpose.msra.mxu0 0.0
    %793 = vmatprep.subr.mxu0 0.0
    %794 = vmatpush1.xpose.msra.mxu0 0.0
    %795 = vmatprep.subr.mxu0 0.0
    %796 = vmatpush1.xpose.msra.mxu0 0.0
    %797 = vmatprep.subr.mxu0 0.0
    %798 = vmatpush1.xpose.msra.mxu0 %v765
    %799 = vmatprep.subr.mxu0 0.0
    %800 = vmatpush2.xpose.msra.mxu0 0.0
    %801 = vmatprep.subr.mxu0 0.0
    %802 = vmatpush2.xpose.msra.mxu0 0.0
    %803 = vmatprep.subr.mxu0 0.0
    %804 = vmatpush2.xpose.msra.mxu0 0.0
    %805 = vmatprep.subr.mxu0 0.0
    %806 = vmatpush2.xpose.msra.mxu0 0.0
    %807 = vmatprep.subr.mxu0 0.0
    %808 = vmatpush2.xpose.msra.mxu0 0.0
    %809 = vmatprep.subr.mxu0 0.0
    %810 = vmatpush2.xpose.msra.mxu0 0.0
    %811 = vmatprep.subr.mxu0 0.0
    %812 = vmatpush2.xpose.msra.mxu0 0.0
    %813 = vmatprep.subr.mxu0 0.0
    %814 = vmatpush2.xpose.msra.mxu0 0.0
    %815 = vmatprep.subr.mxu0 0.0
    %816 = vmatpush2.xpose.msra.mxu0 0.0
    %817 = vmatprep.subr.mxu0 0.0
    %818 = vmatpush2.xpose.msra.mxu0 0.0
    %819 = vmatprep.subr.mxu0 0.0
    %820 = vmatpush2.xpose.msra.mxu0 0.0
    %821 = vmatprep.subr.mxu0 0.0
    %822 = vmatpush2.xpose.msra.mxu0 0.0
    %823 = vmatprep.subr.mxu0 0.0
    %824 = vmatpush2.xpose.msra.mxu0 0.0
    %825 = vmatprep.subr.mxu0 0.0
    %826 = vmatpush2.xpose.msra.mxu0 0.0
    %827 = vmatprep.subr.mxu0 0.0
    %828 = vmatpush2.xpose.msra.mxu0 0.0
    %829 = vmatprep.subr.mxu0 0.0
    %830 = vmatpush2.xpose.msra.mxu0 0.0
    %831 = vmatprep.mubr.f32.mxu0 0.0
    %832 = vmatmul.mubr.f32.gmra.mxu0 %v57
    %v833 = vpop.f32.mrf.mxu0
    %v834 = vadd.f32 0.0, %v833
    %v835 = vpop.f32.mrf.mxu0
    %836 = vmatprep.mubr.f32.mxu0 0.0
    %837 = vmatmul.mubr.f32.gmra.mxu0 %v60
    %v838 = vpop.f32.mrf.mxu0
    %v839 = vadd.f32 0.0, %v838
    %v840 = vpop.f32.mrf.mxu0
    %841 = vdwg.mxu0
    %v843 = vsel %vm55, %v53, 0
    %845 = vmatprep.subr.mxu0 0.0
    %846 = vmatpush1.xpose.msra.mxu0 0.0
    %847 = vmatprep.subr.mxu0 0.0
    %848 = vmatpush1.xpose.msra.mxu0 0.0
    %849 = vmatprep.subr.mxu0 0.0
    %850 = vmatpush1.xpose.msra.mxu0 0.0
    %851 = vmatprep.subr.mxu0 0.0
    %852 = vmatpush1.xpose.msra.mxu0 0.0
    %853 = vmatprep.subr.mxu0 0.0
    %854 = vmatpush1.xpose.msra.mxu0 0.0
    %855 = vmatprep.subr.mxu0 0.0
    %856 = vmatpush1.xpose.msra.mxu0 0.0
    %857 = vmatprep.subr.mxu0 0.0
    %858 = vmatpush1.xpose.msra.mxu0 0.0
    %859 = vmatprep.subr.mxu0 0.0
    %860 = vmatpush1.xpose.msra.mxu0 0.0
    %861 = vmatprep.subr.mxu0 0.0
    %862 = vmatpush1.xpose.msra.mxu0 0.0
    %863 = vmatprep.subr.mxu0 0.0
    %864 = vmatpush1.xpose.msra.mxu0 0.0
    %865 = vmatprep.subr.mxu0 0.0
    %866 = vmatpush1.xpose.msra.mxu0 0.0
    %867 = vmatprep.subr.mxu0 0.0
    %868 = vmatpush1.xpose.msra.mxu0 0.0
    %869 = vmatprep.subr.mxu0 0.0
    %870 = vmatpush1.xpose.msra.mxu0 0.0
    %871 = vmatprep.subr.mxu0 0.0
    %872 = vmatpush1.xpose.msra.mxu0 0.0
    %873 = vmatprep.subr.mxu0 0.0
    %874 = vmatpush1.xpose.msra.mxu0 0.0
    %875 = vmatprep.subr.mxu0 0.0
    %876 = vmatpush1.xpose.msra.mxu0 %v843
    %877 = vmatprep.subr.mxu0 0.0
    %878 = vmatpush2.xpose.msra.mxu0 0.0
    %879 = vmatprep.subr.mxu0 0.0
    %880 = vmatpush2.xpose.msra.mxu0 0.0
    %881 = vmatprep.subr.mxu0 0.0
    %882 = vmatpush2.xpose.msra.mxu0 0.0
    %883 = vmatprep.subr.mxu0 0.0
    %884 = vmatpush2.xpose.msra.mxu0 0.0
    %885 = vmatprep.subr.mxu0 0.0
    %886 = vmatpush2.xpose.msra.mxu0 0.0
    %887 = vmatprep.subr.mxu0 0.0
    %888 = vmatpush2.xpose.msra.mxu0 0.0
    %889 = vmatprep.subr.mxu0 0.0
    %890 = vmatpush2.xpose.msra.mxu0 0.0
    %891 = vmatprep.subr.mxu0 0.0
    %892 = vmatpush2.xpose.msra.mxu0 0.0
    %893 = vmatprep.subr.mxu0 0.0
    %894 = vmatpush2.xpose.msra.mxu0 0.0
    %895 = vmatprep.subr.mxu0 0.0
    %896 = vmatpush2.xpose.msra.mxu0 0.0
    %897 = vmatprep.subr.mxu0 0.0
    %898 = vmatpush2.xpose.msra.mxu0 0.0
    %899 = vmatprep.subr.mxu0 0.0
    %900 = vmatpush2.xpose.msra.mxu0 0.0
    %901 = vmatprep.subr.mxu0 0.0
    %902 = vmatpush2.xpose.msra.mxu0 0.0
    %903 = vmatprep.subr.mxu0 0.0
    %904 = vmatpush2.xpose.msra.mxu0 0.0
    %905 = vmatprep.subr.mxu0 0.0
    %906 = vmatpush2.xpose.msra.mxu0 0.0
    %907 = vmatprep.subr.mxu0 0.0
    %908 = vmatpush2.xpose.msra.mxu0 0.0
    %909 = vmatprep.mubr.f32.mxu0 0.0
    %910 = vmatmul.mubr.f32.gmra.mxu0 %v57
    %v911 = vpop.f32.mrf.mxu0
    %v912 = vadd.f32 0.0, %v911
    %v913 = vpop.f32.mrf.mxu0
    %914 = vmatprep.mubr.f32.mxu0 0.0
    %915 = vmatmul.mubr.f32.gmra.mxu0 %v60
    %v916 = vpop.f32.mrf.mxu0
    %v917 = vadd.f32 0.0, %v916
    %v918 = vpop.f32.mrf.mxu0
    %919 = vdwg.mxu0
    %v921 = vsel %vm55, %v54, 0
    %923 = vmatprep.subr.mxu0 0.0
    %924 = vmatpush1.xpose.msra.mxu0 0.0
    %925 = vmatprep.subr.mxu0 0.0
    %926 = vmatpush1.xpose.msra.mxu0 0.0
    %927 = vmatprep.subr.mxu0 0.0
    %928 = vmatpush1.xpose.msra.mxu0 0.0
    %929 = vmatprep.subr.mxu0 0.0
    %930 = vmatpush1.xpose.msra.mxu0 0.0
    %931 = vmatprep.subr.mxu0 0.0
    %932 = vmatpush1.xpose.msra.mxu0 0.0
    %933 = vmatprep.subr.mxu0 0.0
    %934 = vmatpush1.xpose.msra.mxu0 0.0
    %935 = vmatprep.subr.mxu0 0.0
    %936 = vmatpush1.xpose.msra.mxu0 0.0
    %937 = vmatprep.subr.mxu0 0.0
    %938 = vmatpush1.xpose.msra.mxu0 0.0
    %939 = vmatprep.subr.mxu0 0.0
    %940 = vmatpush1.xpose.msra.mxu0 0.0
    %941 = vmatprep.subr.mxu0 0.0
    %942 = vmatpush1.xpose.msra.mxu0 0.0
    %943 = vmatprep.subr.mxu0 0.0
    %944 = vmatpush1.xpose.msra.mxu0 0.0
    %945 = vmatprep.subr.mxu0 0.0
    %946 = vmatpush1.xpose.msra.mxu0 0.0
    %947 = vmatprep.subr.mxu0 0.0
    %948 = vmatpush1.xpose.msra.mxu0 0.0
    %949 = vmatprep.subr.mxu0 0.0
    %950 = vmatpush1.xpose.msra.mxu0 0.0
    %951 = vmatprep.subr.mxu0 0.0
    %952 = vmatpush1.xpose.msra.mxu0 0.0
    %953 = vmatprep.subr.mxu0 0.0
    %954 = vmatpush1.xpose.msra.mxu0 %v921
    %955 = vmatprep.subr.mxu0 0.0
    %956 = vmatpush2.xpose.msra.mxu0 0.0
    %957 = vmatprep.subr.mxu0 0.0
    %958 = vmatpush2.xpose.msra.mxu0 0.0
    %959 = vmatprep.subr.mxu0 0.0
    %960 = vmatpush2.xpose.msra.mxu0 0.0
    %961 = vmatprep.subr.mxu0 0.0
    %962 = vmatpush2.xpose.msra.mxu0 0.0
    %963 = vmatprep.subr.mxu0 0.0
    %964 = vmatpush2.xpose.msra.mxu0 0.0
    %965 = vmatprep.subr.mxu0 0.0
    %966 = vmatpush2.xpose.msra.mxu0 0.0
    %967 = vmatprep.subr.mxu0 0.0
    %968 = vmatpush2.xpose.msra.mxu0 0.0
    %969 = vmatprep.subr.mxu0 0.0
    %970 = vmatpush2.xpose.msra.mxu0 0.0
    %971 = vmatprep.subr.mxu0 0.0
    %972 = vmatpush2.xpose.msra.mxu0 0.0
    %973 = vmatprep.subr.mxu0 0.0
    %974 = vmatpush2.xpose.msra.mxu0 0.0
    %975 = vmatprep.subr.mxu0 0.0
    %976 = vmatpush2.xpose.msra.mxu0 0.0
    %977 = vmatprep.subr.mxu0 0.0
    %978 = vmatpush2.xpose.msra.mxu0 0.0
    %979 = vmatprep.subr.mxu0 0.0
    %980 = vmatpush2.xpose.msra.mxu0 0.0
    %981 = vmatprep.subr.mxu0 0.0
    %982 = vmatpush2.xpose.msra.mxu0 0.0
    %983 = vmatprep.subr.mxu0 0.0
    %984 = vmatpush2.xpose.msra.mxu0 0.0
    %985 = vmatprep.subr.mxu0 0.0
    %986 = vmatpush2.xpose.msra.mxu0 0.0
    %987 = vmatprep.mubr.f32.mxu0 0.0
    %988 = vmatmul.mubr.f32.gmra.mxu0 %v57
    %v989 = vpop.f32.mrf.mxu0
    %v990 = vadd.f32 0.0, %v989
    %v991 = vpop.f32.mrf.mxu0
    %992 = vmatprep.mubr.f32.mxu0 0.0
    %993 = vmatmul.mubr.f32.gmra.mxu0 %v60
    %v994 = vpop.f32.mrf.mxu0
    %v995 = vadd.f32 0.0, %v994
    %v996 = vpop.f32.mrf.mxu0
    %997 = vdwg.mxu0
    %vm998 = vcmask 64512
    %v1000 = vsel %vm998, %v132, 0
    %v1003 = vsel %vm998, %v444, 0
    %1005 = vmatprep.subr.mxu0 0.0
    %1006 = vmatpush1.xpose.msra.mxu0 0.0
    %1007 = vmatprep.subr.mxu0 0.0
    %1008 = vmatpush1.xpose.msra.mxu0 0.0
    %1009 = vmatprep.subr.mxu0 0.0
    %1010 = vmatpush1.xpose.msra.mxu0 0.0
    %1011 = vmatprep.subr.mxu0 0.0
    %1012 = vmatpush1.xpose.msra.mxu0 0.0
    %1013 = vmatprep.subr.mxu0 0.0
    %1014 = vmatpush1.xpose.msra.mxu0 0.0
    %1015 = vmatprep.subr.mxu0 0.0
    %1016 = vmatpush1.xpose.msra.mxu0 0.0
    %1017 = vmatprep.subr.mxu0 0.0
    %1018 = vmatpush1.xpose.msra.mxu0 0.0
    %1019 = vmatprep.subr.mxu0 0.0
    %1020 = vmatpush1.xpose.msra.mxu0 0.0
    %1021 = vmatprep.subr.mxu0 0.0
    %1022 = vmatpush1.xpose.msra.mxu0 0.0
    %1023 = vmatprep.subr.mxu0 0.0
    %1024 = vmatpush1.xpose.msra.mxu0 0.0
    %1025 = vmatprep.subr.mxu0 0.0
    %1026 = vmatpush1.xpose.msra.mxu0 0.0
    %1027 = vmatprep.subr.mxu0 0.0
    %1028 = vmatpush1.xpose.msra.mxu0 0.0
    %1029 = vmatprep.subr.mxu0 0.0
    %1030 = vmatpush1.xpose.msra.mxu0 0.0
    %1031 = vmatprep.subr.mxu0 0.0
    %1032 = vmatpush1.xpose.msra.mxu0 0.0
    %1033 = vmatprep.subr.mxu0 0.0
    %1034 = vmatpush1.xpose.msra.mxu0 0.0
    %1035 = vmatprep.subr.mxu0 0.0
    %1036 = vmatpush1.xpose.msra.mxu0 %v1003
    %1037 = vmatprep.subr.mxu0 0.0
    %1038 = vmatpush2.xpose.msra.mxu0 0.0
    %1039 = vmatprep.subr.mxu0 0.0
    %1040 = vmatpush2.xpose.msra.mxu0 0.0
    %1041 = vmatprep.subr.mxu0 0.0
    %1042 = vmatpush2.xpose.msra.mxu0 0.0
    %1043 = vmatprep.subr.mxu0 0.0
    %1044 = vmatpush2.xpose.msra.mxu0 0.0
    %1045 = vmatprep.subr.mxu0 0.0
    %1046 = vmatpush2.xpose.msra.mxu0 0.0
    %1047 = vmatprep.subr.mxu0 0.0
    %1048 = vmatpush2.xpose.msra.mxu0 0.0
    %1049 = vmatprep.subr.mxu0 0.0
    %1050 = vmatpush2.xpose.msra.mxu0 0.0
    %1051 = vmatprep.subr.mxu0 0.0
    %1052 = vmatpush2.xpose.msra.mxu0 0.0
    %1053 = vmatprep.subr.mxu0 0.0
    %1054 = vmatpush2.xpose.msra.mxu0 0.0
    %1055 = vmatprep.subr.mxu0 0.0
    %1056 = vmatpush2.xpose.msra.mxu0 0.0
    %1057 = vmatprep.subr.mxu0 0.0
    %1058 = vmatpush2.xpose.msra.mxu0 0.0
    %1059 = vmatprep.subr.mxu0 0.0
    %1060 = vmatpush2.xpose.msra.mxu0 0.0
    %1061 = vmatprep.subr.mxu0 0.0
    %1062 = vmatpush2.xpose.msra.mxu0 0.0
    %1063 = vmatprep.subr.mxu0 0.0
    %1064 = vmatpush2.xpose.msra.mxu0 0.0
    %1065 = vmatprep.subr.mxu0 0.0
    %1066 = vmatpush2.xpose.msra.mxu0 0.0
    %1067 = vmatprep.subr.mxu0 0.0
    %1068 = vmatpush2.xpose.msra.mxu0 0.0
    %1069 = vmatprep.mubr.f32.mxu0 0.0
    %1070 = vmatmul.mubr.f32.gmra.mxu0 %v1000
    %v1071 = vpop.f32.mrf.mxu0
    %v1072 = vadd.f32 0.0, %v1071
    %v1073 = vpop.f32.mrf.mxu0
    %1074 = vdwg.mxu0
    %v1076 = vsel %vm998, %v137, 0
    %v1079 = vsel %vm998, %v449, 0
    %1081 = vmatprep.subr.mxu0 0.0
    %1082 = vmatpush1.xpose.msra.mxu0 0.0
    %1083 = vmatprep.subr.mxu0 0.0
    %1084 = vmatpush1.xpose.msra.mxu0 0.0
    %1085 = vmatprep.subr.mxu0 0.0
    %1086 = vmatpush1.xpose.msra.mxu0 0.0
    %1087 = vmatprep.subr.mxu0 0.0
    %1088 = vmatpush1.xpose.msra.mxu0 0.0
    %1089 = vmatprep.subr.mxu0 0.0
    %1090 = vmatpush1.xpose.msra.mxu0 0.0
    %1091 = vmatprep.subr.mxu0 0.0
    %1092 = vmatpush1.xpose.msra.mxu0 0.0
    %1093 = vmatprep.subr.mxu0 0.0
    %1094 = vmatpush1.xpose.msra.mxu0 0.0
    %1095 = vmatprep.subr.mxu0 0.0
    %1096 = vmatpush1.xpose.msra.mxu0 0.0
    %1097 = vmatprep.subr.mxu0 0.0
    %1098 = vmatpush1.xpose.msra.mxu0 0.0
    %1099 = vmatprep.subr.mxu0 0.0
    %1100 = vmatpush1.xpose.msra.mxu0 0.0
    %1101 = vmatprep.subr.mxu0 0.0
    %1102 = vmatpush1.xpose.msra.mxu0 0.0
    %1103 = vmatprep.subr.mxu0 0.0
    %1104 = vmatpush1.xpose.msra.mxu0 0.0
    %1105 = vmatprep.subr.mxu0 0.0
    %1106 = vmatpush1.xpose.msra.mxu0 0.0
    %1107 = vmatprep.subr.mxu0 0.0
    %1108 = vmatpush1.xpose.msra.mxu0 0.0
    %1109 = vmatprep.subr.mxu0 0.0
    %1110 = vmatpush1.xpose.msra.mxu0 0.0
    %1111 = vmatprep.subr.mxu0 0.0
    %1112 = vmatpush1.xpose.msra.mxu0 %v1079
    %1113 = vmatprep.subr.mxu0 0.0
    %1114 = vmatpush2.xpose.msra.mxu0 0.0
    %1115 = vmatprep.subr.mxu0 0.0
    %1116 = vmatpush2.xpose.msra.mxu0 0.0
    %1117 = vmatprep.subr.mxu0 0.0
    %1118 = vmatpush2.xpose.msra.mxu0 0.0
    %1119 = vmatprep.subr.mxu0 0.0
    %1120 = vmatpush2.xpose.msra.mxu0 0.0
    %1121 = vmatprep.subr.mxu0 0.0
    %1122 = vmatpush2.xpose.msra.mxu0 0.0
    %1123 = vmatprep.subr.mxu0 0.0
    %1124 = vmatpush2.xpose.msra.mxu0 0.0
    %1125 = vmatprep.subr.mxu0 0.0
    %1126 = vmatpush2.xpose.msra.mxu0 0.0
    %1127 = vmatprep.subr.mxu0 0.0
    %1128 = vmatpush2.xpose.msra.mxu0 0.0
    %1129 = vmatprep.subr.mxu0 0.0
    %1130 = vmatpush2.xpose.msra.mxu0 0.0
    %1131 = vmatprep.subr.mxu0 0.0
    %1132 = vmatpush2.xpose.msra.mxu0 0.0
    %1133 = vmatprep.subr.mxu0 0.0
    %1134 = vmatpush2.xpose.msra.mxu0 0.0
    %1135 = vmatprep.subr.mxu0 0.0
    %1136 = vmatpush2.xpose.msra.mxu0 0.0
    %1137 = vmatprep.subr.mxu0 0.0
    %1138 = vmatpush2.xpose.msra.mxu0 0.0
    %1139 = vmatprep.subr.mxu0 0.0
    %1140 = vmatpush2.xpose.msra.mxu0 0.0
    %1141 = vmatprep.subr.mxu0 0.0
    %1142 = vmatpush2.xpose.msra.mxu0 0.0
    %1143 = vmatprep.subr.mxu0 0.0
    %1144 = vmatpush2.xpose.msra.mxu0 0.0
    %1145 = vmatprep.mubr.f32.mxu0 0.0
    %1146 = vmatmul.mubr.f32.gmra.mxu0 %v1076
    %v1147 = vpop.f32.mrf.mxu0
    %v1148 = vadd.f32 0.0, %v1147
    %v1149 = vpop.f32.mrf.mxu0
    %1150 = vdwg.mxu0
    %v1152 = vsel %vm998, %v210, 0
    %v1155 = vsel %vm998, %v522, 0
    %1157 = vmatprep.subr.mxu0 0.0
    %1158 = vmatpush1.xpose.msra.mxu0 0.0
    %1159 = vmatprep.subr.mxu0 0.0
    %1160 = vmatpush1.xpose.msra.mxu0 0.0
    %1161 = vmatprep.subr.mxu0 0.0
    %1162 = vmatpush1.xpose.msra.mxu0 0.0
    %1163 = vmatprep.subr.mxu0 0.0
    %1164 = vmatpush1.xpose.msra.mxu0 0.0
    %1165 = vmatprep.subr.mxu0 0.0
    %1166 = vmatpush1.xpose.msra.mxu0 0.0
    %1167 = vmatprep.subr.mxu0 0.0
    %1168 = vmatpush1.xpose.msra.mxu0 0.0
    %1169 = vmatprep.subr.mxu0 0.0
    %1170 = vmatpush1.xpose.msra.mxu0 0.0
    %1171 = vmatprep.subr.mxu0 0.0
    %1172 = vmatpush1.xpose.msra.mxu0 0.0
    %1173 = vmatprep.subr.mxu0 0.0
    %1174 = vmatpush1.xpose.msra.mxu0 0.0
    %1175 = vmatprep.subr.mxu0 0.0
    %1176 = vmatpush1.xpose.msra.mxu0 0.0
    %1177 = vmatprep.subr.mxu0 0.0
    %1178 = vmatpush1.xpose.msra.mxu0 0.0
    %1179 = vmatprep.subr.mxu0 0.0
    %1180 = vmatpush1.xpose.msra.mxu0 0.0
    %1181 = vmatprep.subr.mxu0 0.0
    %1182 = vmatpush1.xpose.msra.mxu0 0.0
    %1183 = vmatprep.subr.mxu0 0.0
    %1184 = vmatpush1.xpose.msra.mxu0 0.0
    %1185 = vmatprep.subr.mxu0 0.0
    %1186 = vmatpush1.xpose.msra.mxu0 0.0
    %1187 = vmatprep.subr.mxu0 0.0
    %1188 = vmatpush1.xpose.msra.mxu0 %v1155
    %1189 = vmatprep.subr.mxu0 0.0
    %1190 = vmatpush2.xpose.msra.mxu0 0.0
    %1191 = vmatprep.subr.mxu0 0.0
    %1192 = vmatpush2.xpose.msra.mxu0 0.0
    %1193 = vmatprep.subr.mxu0 0.0
    %1194 = vmatpush2.xpose.msra.mxu0 0.0
    %1195 = vmatprep.subr.mxu0 0.0
    %1196 = vmatpush2.xpose.msra.mxu0 0.0
    %1197 = vmatprep.subr.mxu0 0.0
    %1198 = vmatpush2.xpose.msra.mxu0 0.0
    %1199 = vmatprep.subr.mxu0 0.0
    %1200 = vmatpush2.xpose.msra.mxu0 0.0
    %1201 = vmatprep.subr.mxu0 0.0
    %1202 = vmatpush2.xpose.msra.mxu0 0.0
    %1203 = vmatprep.subr.mxu0 0.0
    %1204 = vmatpush2.xpose.msra.mxu0 0.0
    %1205 = vmatprep.subr.mxu0 0.0
    %1206 = vmatpush2.xpose.msra.mxu0 0.0
    %1207 = vmatprep.subr.mxu0 0.0
    %1208 = vmatpush2.xpose.msra.mxu0 0.0
    %1209 = vmatprep.subr.mxu0 0.0
    %1210 = vmatpush2.xpose.msra.mxu0 0.0
    %1211 = vmatprep.subr.mxu0 0.0
    %1212 = vmatpush2.xpose.msra.mxu0 0.0
    %1213 = vmatprep.subr.mxu0 0.0
    %1214 = vmatpush2.xpose.msra.mxu0 0.0
    %1215 = vmatprep.subr.mxu0 0.0
    %1216 = vmatpush2.xpose.msra.mxu0 0.0
    %1217 = vmatprep.subr.mxu0 0.0
    %1218 = vmatpush2.xpose.msra.mxu0 0.0
    %1219 = vmatprep.subr.mxu0 0.0
    %1220 = vmatpush2.xpose.msra.mxu0 0.0
    %1221 = vmatprep.mubr.f32.mxu0 0.0
    %1222 = vmatmul.mubr.f32.gmra.mxu0 %v1152
    %v1223 = vpop.f32.mrf.mxu0
    %v1224 = vadd.f32 0.0, %v1223
    %v1225 = vpop.f32.mrf.mxu0
    %1226 = vdwg.mxu0
    %v1228 = vsel %vm998, %v215, 0
    %v1231 = vsel %vm998, %v527, 0
    %1233 = vmatprep.subr.mxu0 0.0
    %1234 = vmatpush1.xpose.msra.mxu0 0.0
    %1235 = vmatprep.subr.mxu0 0.0
    %1236 = vmatpush1.xpose.msra.mxu0 0.0
    %1237 = vmatprep.subr.mxu0 0.0
    %1238 = vmatpush1.xpose.msra.mxu0 0.0
    %1239 = vmatprep.subr.mxu0 0.0
    %1240 = vmatpush1.xpose.msra.mxu0 0.0
    %1241 = vmatprep.subr.mxu0 0.0
    %1242 = vmatpush1.xpose.msra.mxu0 0.0
    %1243 = vmatprep.subr.mxu0 0.0
    %1244 = vmatpush1.xpose.msra.mxu0 0.0
    %1245 = vmatprep.subr.mxu0 0.0
    %1246 = vmatpush1.xpose.msra.mxu0 0.0
    %1247 = vmatprep.subr.mxu0 0.0
    %1248 = vmatpush1.xpose.msra.mxu0 0.0
    %1249 = vmatprep.subr.mxu0 0.0
    %1250 = vmatpush1.xpose.msra.mxu0 0.0
    %1251 = vmatprep.subr.mxu0 0.0
    %1252 = vmatpush1.xpose.msra.mxu0 0.0
    %1253 = vmatprep.subr.mxu0 0.0
    %1254 = vmatpush1.xpose.msra.mxu0 0.0
    %1255 = vmatprep.subr.mxu0 0.0
    %1256 = vmatpush1.xpose.msra.mxu0 0.0
    %1257 = vmatprep.subr.mxu0 0.0
    %1258 = vmatpush1.xpose.msra.mxu0 0.0
    %1259 = vmatprep.subr.mxu0 0.0
    %1260 = vmatpush1.xpose.msra.mxu0 0.0
    %1261 = vmatprep.subr.mxu0 0.0
    %1262 = vmatpush1.xpose.msra.mxu0 0.0
    %1263 = vmatprep.subr.mxu0 0.0
    %1264 = vmatpush1.xpose.msra.mxu0 %v1231
    %1265 = vmatprep.subr.mxu0 0.0
    %1266 = vmatpush2.xpose.msra.mxu0 0.0
    %1267 = vmatprep.subr.mxu0 0.0
    %1268 = vmatpush2.xpose.msra.mxu0 0.0
    %1269 = vmatprep.subr.mxu0 0.0
    %1270 = vmatpush2.xpose.msra.mxu0 0.0
    %1271 = vmatprep.subr.mxu0 0.0
    %1272 = vmatpush2.xpose.msra.mxu0 0.0
    %1273 = vmatprep.subr.mxu0 0.0
    %1274 = vmatpush2.xpose.msra.mxu0 0.0
    %1275 = vmatprep.subr.mxu0 0.0
    %1276 = vmatpush2.xpose.msra.mxu0 0.0
    %1277 = vmatprep.subr.mxu0 0.0
    %1278 = vmatpush2.xpose.msra.mxu0 0.0
    %1279 = vmatprep.subr.mxu0 0.0
    %1280 = vmatpush2.xpose.msra.mxu0 0.0
    %1281 = vmatprep.subr.mxu0 0.0
    %1282 = vmatpush2.xpose.msra.mxu0 0.0
    %1283 = vmatprep.subr.mxu0 0.0
    %1284 = vmatpush2.xpose.msra.mxu0 0.0
    %1285 = vmatprep.subr.mxu0 0.0
    %1286 = vmatpush2.xpose.msra.mxu0 0.0
    %1287 = vmatprep.subr.mxu0 0.0
    %1288 = vmatpush2.xpose.msra.mxu0 0.0
    %1289 = vmatprep.subr.mxu0 0.0
    %1290 = vmatpush2.xpose.msra.mxu0 0.0
    %1291 = vmatprep.subr.mxu0 0.0
    %1292 = vmatpush2.xpose.msra.mxu0 0.0
    %1293 = vmatprep.subr.mxu0 0.0
    %1294 = vmatpush2.xpose.msra.mxu0 0.0
    %1295 = vmatprep.subr.mxu0 0.0
    %1296 = vmatpush2.xpose.msra.mxu0 0.0
    %1297 = vmatprep.mubr.f32.mxu0 0.0
    %1298 = vmatmul.mubr.f32.gmra.mxu0 %v1228
    %v1299 = vpop.f32.mrf.mxu0
    %v1300 = vadd.f32 0.0, %v1299
    %v1301 = vpop.f32.mrf.mxu0
    %1302 = vdwg.mxu0
    %v1304 = vsel %vm998, %v288, 0
    %v1307 = vsel %vm998, %v600, 0
    %1309 = vmatprep.subr.mxu0 0.0
    %1310 = vmatpush1.xpose.msra.mxu0 0.0
    %1311 = vmatprep.subr.mxu0 0.0
    %1312 = vmatpush1.xpose.msra.mxu0 0.0
    %1313 = vmatprep.subr.mxu0 0.0
    %1314 = vmatpush1.xpose.msra.mxu0 0.0
    %1315 = vmatprep.subr.mxu0 0.0
    %1316 = vmatpush1.xpose.msra.mxu0 0.0
    %1317 = vmatprep.subr.mxu0 0.0
    %1318 = vmatpush1.xpose.msra.mxu0 0.0
    %1319 = vmatprep.subr.mxu0 0.0
    %1320 = vmatpush1.xpose.msra.mxu0 0.0
    %1321 = vmatprep.subr.mxu0 0.0
    %1322 = vmatpush1.xpose.msra.mxu0 0.0
    %1323 = vmatprep.subr.mxu0 0.0
    %1324 = vmatpush1.xpose.msra.mxu0 0.0
    %1325 = vmatprep.subr.mxu0 0.0
    %1326 = vmatpush1.xpose.msra.mxu0 0.0
    %1327 = vmatprep.subr.mxu0 0.0
    %1328 = vmatpush1.xpose.msra.mxu0 0.0
    %1329 = vmatprep.subr.mxu0 0.0
    %1330 = vmatpush1.xpose.msra.mxu0 0.0
    %1331 = vmatprep.subr.mxu0 0.0
    %1332 = vmatpush1.xpose.msra.mxu0 0.0
    %1333 = vmatprep.subr.mxu0 0.0
    %1334 = vmatpush1.xpose.msra.mxu0 0.0
    %1335 = vmatprep.subr.mxu0 0.0
    %1336 = vmatpush1.xpose.msra.mxu0 0.0
    %1337 = vmatprep.subr.mxu0 0.0
    %1338 = vmatpush1.xpose.msra.mxu0 0.0
    %1339 = vmatprep.subr.mxu0 0.0
    %1340 = vmatpush1.xpose.msra.mxu0 %v1307
    %1341 = vmatprep.subr.mxu0 0.0
    %1342 = vmatpush2.xpose.msra.mxu0 0.0
    %1343 = vmatprep.subr.mxu0 0.0
    %1344 = vmatpush2.xpose.msra.mxu0 0.0
    %1345 = vmatprep.subr.mxu0 0.0
    %1346 = vmatpush2.xpose.msra.mxu0 0.0
    %1347 = vmatprep.subr.mxu0 0.0
    %1348 = vmatpush2.xpose.msra.mxu0 0.0
    %1349 = vmatprep.subr.mxu0 0.0
    %1350 = vmatpush2.xpose.msra.mxu0 0.0
    %1351 = vmatprep.subr.mxu0 0.0
    %1352 = vmatpush2.xpose.msra.mxu0 0.0
    %1353 = vmatprep.subr.mxu0 0.0
    %1354 = vmatpush2.xpose.msra.mxu0 0.0
    %1355 = vmatprep.subr.mxu0 0.0
    %1356 = vmatpush2.xpose.msra.mxu0 0.0
    %1357 = vmatprep.subr.mxu0 0.0
    %1358 = vmatpush2.xpose.msra.mxu0 0.0
    %1359 = vmatprep.subr.mxu0 0.0
    %1360 = vmatpush2.xpose.msra.mxu0 0.0
    %1361 = vmatprep.subr.mxu0 0.0
    %1362 = vmatpush2.xpose.msra.mxu0 0.0
    %1363 = vmatprep.subr.mxu0 0.0
    %1364 = vmatpush2.xpose.msra.mxu0 0.0
    %1365 = vmatprep.subr.mxu0 0.0
    %1366 = vmatpush2.xpose.msra.mxu0 0.0
    %1367 = vmatprep.subr.mxu0 0.0
    %1368 = vmatpush2.xpose.msra.mxu0 0.0
    %1369 = vmatprep.subr.mxu0 0.0
    %1370 = vmatpush2.xpose.msra.mxu0 0.0
    %1371 = vmatprep.subr.mxu0 0.0
    %1372 = vmatpush2.xpose.msra.mxu0 0.0
    %1373 = vmatprep.mubr.f32.mxu0 0.0
    %1374 = vmatmul.mubr.f32.gmra.mxu0 %v1304
    %v1375 = vpop.f32.mrf.mxu0
    %v1376 = vadd.f32 0.0, %v1375
    %v1377 = vpop.f32.mrf.mxu0
    %1378 = vdwg.mxu0
    %v1380 = vsel %vm998, %v293, 0
    %v1383 = vsel %vm998, %v605, 0
    %1385 = vmatprep.subr.mxu0 0.0
    %1386 = vmatpush1.xpose.msra.mxu0 0.0
    %1387 = vmatprep.subr.mxu0 0.0
    %1388 = vmatpush1.xpose.msra.mxu0 0.0
    %1389 = vmatprep.subr.mxu0 0.0
    %1390 = vmatpush1.xpose.msra.mxu0 0.0
    %1391 = vmatprep.subr.mxu0 0.0
    %1392 = vmatpush1.xpose.msra.mxu0 0.0
    %1393 = vmatprep.subr.mxu0 0.0
    %1394 = vmatpush1.xpose.msra.mxu0 0.0
    %1395 = vmatprep.subr.mxu0 0.0
    %1396 = vmatpush1.xpose.msra.mxu0 0.0
    %1397 = vmatprep.subr.mxu0 0.0
    %1398 = vmatpush1.xpose.msra.mxu0 0.0
    %1399 = vmatprep.subr.mxu0 0.0
    %1400 = vmatpush1.xpose.msra.mxu0 0.0
    %1401 = vmatprep.subr.mxu0 0.0
    %1402 = vmatpush1.xpose.msra.mxu0 0.0
    %1403 = vmatprep.subr.mxu0 0.0
    %1404 = vmatpush1.xpose.msra.mxu0 0.0
    %1405 = vmatprep.subr.mxu0 0.0
    %1406 = vmatpush1.xpose.msra.mxu0 0.0
    %1407 = vmatprep.subr.mxu0 0.0
    %1408 = vmatpush1.xpose.msra.mxu0 0.0
    %1409 = vmatprep.subr.mxu0 0.0
    %1410 = vmatpush1.xpose.msra.mxu0 0.0
    %1411 = vmatprep.subr.mxu0 0.0
    %1412 = vmatpush1.xpose.msra.mxu0 0.0
    %1413 = vmatprep.subr.mxu0 0.0
    %1414 = vmatpush1.xpose.msra.mxu0 0.0
    %1415 = vmatprep.subr.mxu0 0.0
    %1416 = vmatpush1.xpose.msra.mxu0 %v1383
    %1417 = vmatprep.subr.mxu0 0.0
    %1418 = vmatpush2.xpose.msra.mxu0 0.0
    %1419 = vmatprep.subr.mxu0 0.0
    %1420 = vmatpush2.xpose.msra.mxu0 0.0
    %1421 = vmatprep.subr.mxu0 0.0
    %1422 = vmatpush2.xpose.msra.mxu0 0.0
    %1423 = vmatprep.subr.mxu0 0.0
    %1424 = vmatpush2.xpose.msra.mxu0 0.0
    %1425 = vmatprep.subr.mxu0 0.0
    %1426 = vmatpush2.xpose.msra.mxu0 0.0
    %1427 = vmatprep.subr.mxu0 0.0
    %1428 = vmatpush2.xpose.msra.mxu0 0.0
    %1429 = vmatprep.subr.mxu0 0.0
    %1430 = vmatpush2.xpose.msra.mxu0 0.0
    %1431 = vmatprep.subr.mxu0 0.0
    %1432 = vmatpush2.xpose.msra.mxu0 0.0
    %1433 = vmatprep.subr.mxu0 0.0
    %1434 = vmatpush2.xpose.msra.mxu0 0.0
    %1435 = vmatprep.subr.mxu0 0.0
    %1436 = vmatpush2.xpose.msra.mxu0 0.0
    %1437 = vmatprep.subr.mxu0 0.0
    %1438 = vmatpush2.xpose.msra.mxu0 0.0
    %1439 = vmatprep.subr.mxu0 0.0
    %1440 = vmatpush2.xpose.msra.mxu0 0.0
    %1441 = vmatprep.subr.mxu0 0.0
    %1442 = vmatpush2.xpose.msra.mxu0 0.0
    %1443 = vmatprep.subr.mxu0 0.0
    %1444 = vmatpush2.xpose.msra.mxu0 0.0
    %1445 = vmatprep.subr.mxu0 0.0
    %1446 = vmatpush2.xpose.msra.mxu0 0.0
    %1447 = vmatprep.subr.mxu0 0.0
    %1448 = vmatpush2.xpose.msra.mxu0 0.0
    %1449 = vmatprep.mubr.f32.mxu0 0.0
    %1450 = vmatmul.mubr.f32.gmra.mxu0 %v1380
    %v1451 = vpop.f32.mrf.mxu0
    %v1452 = vadd.f32 0.0, %v1451
    %v1453 = vpop.f32.mrf.mxu0
    %1454 = vdwg.mxu0
    %v1456 = vsel %vm998, %v366, 0
    %v1459 = vsel %vm998, %v678, 0
    %1461 = vmatprep.subr.mxu0 0.0
    %1462 = vmatpush1.xpose.msra.mxu0 0.0
    %1463 = vmatprep.subr.mxu0 0.0
    %1464 = vmatpush1.xpose.msra.mxu0 0.0
    %1465 = vmatprep.subr.mxu0 0.0
    %1466 = vmatpush1.xpose.msra.mxu0 0.0
    %1467 = vmatprep.subr.mxu0 0.0
    %1468 = vmatpush1.xpose.msra.mxu0 0.0
    %1469 = vmatprep.subr.mxu0 0.0
    %1470 = vmatpush1.xpose.msra.mxu0 0.0
    %1471 = vmatprep.subr.mxu0 0.0
    %1472 = vmatpush1.xpose.msra.mxu0 0.0
    %1473 = vmatprep.subr.mxu0 0.0
    %1474 = vmatpush1.xpose.msra.mxu0 0.0
    %1475 = vmatprep.subr.mxu0 0.0
    %1476 = vmatpush1.xpose.msra.mxu0 0.0
    %1477 = vmatprep.subr.mxu0 0.0
    %1478 = vmatpush1.xpose.msra.mxu0 0.0
    %1479 = vmatprep.subr.mxu0 0.0
    %1480 = vmatpush1.xpose.msra.mxu0 0.0
    %1481 = vmatprep.subr.mxu0 0.0
    %1482 = vmatpush1.xpose.msra.mxu0 0.0
    %1483 = vmatprep.subr.mxu0 0.0
    %1484 = vmatpush1.xpose.msra.mxu0 0.0
    %1485 = vmatprep.subr.mxu0 0.0
    %1486 = vmatpush1.xpose.msra.mxu0 0.0
    %1487 = vmatprep.subr.mxu0 0.0
    %1488 = vmatpush1.xpose.msra.mxu0 0.0
    %1489 = vmatprep.subr.mxu0 0.0
    %1490 = vmatpush1.xpose.msra.mxu0 0.0
    %1491 = vmatprep.subr.mxu0 0.0
    %1492 = vmatpush1.xpose.msra.mxu0 %v1459
    %1493 = vmatprep.subr.mxu0 0.0
    %1494 = vmatpush2.xpose.msra.mxu0 0.0
    %1495 = vmatprep.subr.mxu0 0.0
    %1496 = vmatpush2.xpose.msra.mxu0 0.0
    %1497 = vmatprep.subr.mxu0 0.0
    %1498 = vmatpush2.xpose.msra.mxu0 0.0
    %1499 = vmatprep.subr.mxu0 0.0
    %1500 = vmatpush2.xpose.msra.mxu0 0.0
    %1501 = vmatprep.subr.mxu0 0.0
    %1502 = vmatpush2.xpose.msra.mxu0 0.0
    %1503 = vmatprep.subr.mxu0 0.0
    %1504 = vmatpush2.xpose.msra.mxu0 0.0
    %1505 = vmatprep.subr.mxu0 0.0
    %1506 = vmatpush2.xpose.msra.mxu0 0.0
    %1507 = vmatprep.subr.mxu0 0.0
    %1508 = vmatpush2.xpose.msra.mxu0 0.0
    %1509 = vmatprep.subr.mxu0 0.0
    %1510 = vmatpush2.xpose.msra.mxu0 0.0
    %1511 = vmatprep.subr.mxu0 0.0
    %1512 = vmatpush2.xpose.msra.mxu0 0.0
    %1513 = vmatprep.subr.mxu0 0.0
    %1514 = vmatpush2.xpose.msra.mxu0 0.0
    %1515 = vmatprep.subr.mxu0 0.0
    %1516 = vmatpush2.xpose.msra.mxu0 0.0
    %1517 = vmatprep.subr.mxu0 0.0
    %1518 = vmatpush2.xpose.msra.mxu0 0.0
    %1519 = vmatprep.subr.mxu0 0.0
    %1520 = vmatpush2.xpose.msra.mxu0 0.0
    %1521 = vmatprep.subr.mxu0 0.0
    %1522 = vmatpush2.xpose.msra.mxu0 0.0
    %1523 = vmatprep.subr.mxu0 0.0
    %1524 = vmatpush2.xpose.msra.mxu0 0.0
    %1525 = vmatprep.mubr.f32.mxu0 0.0
    %1526 = vmatmul.mubr.f32.gmra.mxu0 %v1456
    %v1527 = vpop.f32.mrf.mxu0
    %v1528 = vadd.f32 0.0, %v1527
    %v1529 = vpop.f32.mrf.mxu0
    %1530 = vdwg.mxu0
    %v1532 = vsel %vm998, %v371, 0
    %v1535 = vsel %vm998, %v683, 0
    %1537 = vmatprep.subr.mxu0 0.0
    %1538 = vmatpush1.xpose.msra.mxu0 0.0
    %1539 = vmatprep.subr.mxu0 0.0
    %1540 = vmatpush1.xpose.msra.mxu0 0.0
    %1541 = vmatprep.subr.mxu0 0.0
    %1542 = vmatpush1.xpose.msra.mxu0 0.0
    %1543 = vmatprep.subr.mxu0 0.0
    %1544 = vmatpush1.xpose.msra.mxu0 0.0
    %1545 = vmatprep.subr.mxu0 0.0
    %1546 = vmatpush1.xpose.msra.mxu0 0.0
    %1547 = vmatprep.subr.mxu0 0.0
    %1548 = vmatpush1.xpose.msra.mxu0 0.0
    %1549 = vmatprep.subr.mxu0 0.0
    %1550 = vmatpush1.xpose.msra.mxu0 0.0
    %1551 = vmatprep.subr.mxu0 0.0
    %1552 = vmatpush1.xpose.msra.mxu0 0.0
    %1553 = vmatprep.subr.mxu0 0.0
    %1554 = vmatpush1.xpose.msra.mxu0 0.0
    %1555 = vmatprep.subr.mxu0 0.0
    %1556 = vmatpush1.xpose.msra.mxu0 0.0
    %1557 = vmatprep.subr.mxu0 0.0
    %1558 = vmatpush1.xpose.msra.mxu0 0.0
    %1559 = vmatprep.subr.mxu0 0.0
    %1560 = vmatpush1.xpose.msra.mxu0 0.0
    %1561 = vmatprep.subr.mxu0 0.0
    %1562 = vmatpush1.xpose.msra.mxu0 0.0
    %1563 = vmatprep.subr.mxu0 0.0
    %1564 = vmatpush1.xpose.msra.mxu0 0.0
    %1565 = vmatprep.subr.mxu0 0.0
    %1566 = vmatpush1.xpose.msra.mxu0 0.0
    %1567 = vmatprep.subr.mxu0 0.0
    %1568 = vmatpush1.xpose.msra.mxu0 %v1535
    %1569 = vmatprep.subr.mxu0 0.0
    %1570 = vmatpush2.xpose.msra.mxu0 0.0
    %1571 = vmatprep.subr.mxu0 0.0
    %1572 = vmatpush2.xpose.msra.mxu0 0.0
    %1573 = vmatprep.subr.mxu0 0.0
    %1574 = vmatpush2.xpose.msra.mxu0 0.0
    %1575 = vmatprep.subr.mxu0 0.0
    %1576 = vmatpush2.xpose.msra.mxu0 0.0
    %1577 = vmatprep.subr.mxu0 0.0
    %1578 = vmatpush2.xpose.msra.mxu0 0.0
    %1579 = vmatprep.subr.mxu0 0.0
    %1580 = vmatpush2.xpose.msra.mxu0 0.0
    %1581 = vmatprep.subr.mxu0 0.0
    %1582 = vmatpush2.xpose.msra.mxu0 0.0
    %1583 = vmatprep.subr.mxu0 0.0
    %1584 = vmatpush2.xpose.msra.mxu0 0.0
    %1585 = vmatprep.subr.mxu0 0.0
    %1586 = vmatpush2.xpose.msra.mxu0 0.0
    %1587 = vmatprep.subr.mxu0 0.0
    %1588 = vmatpush2.xpose.msra.mxu0 0.0
    %1589 = vmatprep.subr.mxu0 0.0
    %1590 = vmatpush2.xpose.msra.mxu0 0.0
    %1591 = vmatprep.subr.mxu0 0.0
    %1592 = vmatpush2.xpose.msra.mxu0 0.0
    %1593 = vmatprep.subr.mxu0 0.0
    %1594 = vmatpush2.xpose.msra.mxu0 0.0
    %1595 = vmatprep.subr.mxu0 0.0
    %1596 = vmatpush2.xpose.msra.mxu0 0.0
    %1597 = vmatprep.subr.mxu0 0.0
    %1598 = vmatpush2.xpose.msra.mxu0 0.0
    %1599 = vmatprep.subr.mxu0 0.0
    %1600 = vmatpush2.xpose.msra.mxu0 0.0
    %1601 = vmatprep.mubr.f32.mxu0 0.0
    %1602 = vmatmul.mubr.f32.gmra.mxu0 %v1532
    %v1603 = vpop.f32.mrf.mxu0
    %v1604 = vadd.f32 0.0, %v1603
    %v1605 = vpop.f32.mrf.mxu0
    %1606 = vdwg.mxu0
    %v1607 = vmul.f32 %v1072, 0.35355338
    %v1608 = vmul.f32 %v1148, 0.35355338
    %v1609 = vmul.f32 %v1224, 0.35355338
    %v1610 = vmul.f32 %v1300, 0.35355338
    %v1611 = vmul.f32 %v1376, 0.35355338
    %v1612 = vmul.f32 %v1452, 0.35355338
    %v1613 = vmul.f32 %v1528, 0.35355338
    %v1614 = vmul.f32 %v1604, 0.35355338
    %v1615 = vsel %vm998, %v1607, -inf
    %1616 = vmax.xlane.f32.xlu0 %v1615
    %v1617 = vpop.xlane.xlu0 %1616
    %v1618 = vsel %vm998, %v1608, -inf
    %1619 = vmax.xlane.f32.xlu0 %v1618
    %v1620 = vpop.xlane.xlu0 %1619
    %v1621 = vsel %vm998, %v1609, -inf
    %1622 = vmax.xlane.f32.xlu0 %v1621
    %v1623 = vpop.xlane.xlu0 %1622
    %v1624 = vsel %vm998, %v1610, -inf
    %1625 = vmax.xlane.f32.xlu0 %v1624
    %v1626 = vpop.xlane.xlu0 %1625
    %v1627 = vsel %vm998, %v1611, -inf
    %1628 = vmax.xlane.f32.xlu0 %v1627
    %v1629 = vpop.xlane.xlu0 %1628
    %v1630 = vsel %vm998, %v1612, -inf
    %1631 = vmax.xlane.f32.xlu0 %v1630
    %v1632 = vpop.xlane.xlu0 %1631
    %v1633 = vsel %vm998, %v1613, -inf
    %1634 = vmax.xlane.f32.xlu0 %v1633
    %v1635 = vpop.xlane.xlu0 %1634
    %v1636 = vsel %vm998, %v1614, -inf
    %1637 = vmax.xlane.f32.xlu0 %v1636
    %v1638 = vpop.xlane.xlu0 %1637
    %v1639 = vsub.f32 %v1607, %v1617
    %v1640 = vsub.f32 %v1608, %v1620
    %v1641 = vsub.f32 %v1609, %v1623
    %v1642 = vsub.f32 %v1610, %v1626
    %v1643 = vsub.f32 %v1611, %v1629
    %v1644 = vsub.f32 %v1612, %v1632
    %v1645 = vsub.f32 %v1613, %v1635
    %v1646 = vsub.f32 %v1614, %v1638
    %v1647 = vmul.f32 %v1639, 1.442695
    %v1648 = vpow.pop %v1647
    %v1649 = vmul.f32 %v1640, 1.442695
    %v1650 = vpow.pop %v1649
    %v1651 = vmul.f32 %v1641, 1.442695
    %v1652 = vpow.pop %v1651
    %v1653 = vmul.f32 %v1642, 1.442695
    %v1654 = vpow.pop %v1653
    %v1655 = vmul.f32 %v1643, 1.442695
    %v1656 = vpow.pop %v1655
    %v1657 = vmul.f32 %v1644, 1.442695
    %v1658 = vpow.pop %v1657
    %v1659 = vmul.f32 %v1645, 1.442695
    %v1660 = vpow.pop %v1659
    %v1661 = vmul.f32 %v1646, 1.442695
    %v1662 = vpow.pop %v1661
    %v1663 = vsel %vm998, %v1648, 0.0
    %1664 = vadd.xlane.f32.xlu0 %v1663
    %v1665 = vpop.xlane.xlu0 %1664
    %v1666 = vsel %vm998, %v1650, 0.0
    %1667 = vadd.xlane.f32.xlu0 %v1666
    %v1668 = vpop.xlane.xlu0 %1667
    %v1669 = vsel %vm998, %v1652, 0.0
    %1670 = vadd.xlane.f32.xlu0 %v1669
    %v1671 = vpop.xlane.xlu0 %1670
    %v1672 = vsel %vm998, %v1654, 0.0
    %1673 = vadd.xlane.f32.xlu0 %v1672
    %v1674 = vpop.xlane.xlu0 %1673
    %v1675 = vsel %vm998, %v1656, 0.0
    %1676 = vadd.xlane.f32.xlu0 %v1675
    %v1677 = vpop.xlane.xlu0 %1676
    %v1678 = vsel %vm998, %v1658, 0.0
    %1679 = vadd.xlane.f32.xlu0 %v1678
    %v1680 = vpop.xlane.xlu0 %1679
    %v1681 = vsel %vm998, %v1660, 0.0
    %1682 = vadd.xlane.f32.xlu0 %v1681
    %v1683 = vpop.xlane.xlu0 %1682
    %v1684 = vsel %vm998, %v1662, 0.0
    %1685 = vadd.xlane.f32.xlu0 %v1684
    %v1686 = vpop.xlane.xlu0 %1685
    %v1687 = vrcp.pop %v1665
    %v1688 = vrcp.pop %v1668
    %v1689 = vrcp.pop %v1671
    %v1690 = vrcp.pop %v1674
    %v1691 = vrcp.pop %v1677
    %v1692 = vrcp.pop %v1680
    %v1693 = vrcp.pop %v1683
    %v1694 = vrcp.pop %v1686
    %v1695 = vmul.f32 %v1648, %v1687
    %v1696 = vmul.f32 %v1650, %v1688
    %v1697 = vmul.f32 %v1652, %v1689
    %v1698 = vmul.f32 %v1654, %v1690
    %v1699 = vmul.f32 %v1656, %v1691
    %v1700 = vmul.f32 %v1658, %v1692
    %v1701 = vmul.f32 %v1660, %v1693
    %v1702 = vmul.f32 %v1662, %v1694
    %v1704 = vsel %vm998, %v1695, 0
    %1706 = vmatprep.subr.mxu0 0.0
    %1707 = vmatpush1.msra.mxu0 0.0
    %1708 = vmatprep.subr.mxu0 0.0
    %1709 = vmatpush1.msra.mxu0 0.0
    %1710 = vmatprep.subr.mxu0 0.0
    %1711 = vmatpush1.msra.mxu0 0.0
    %1712 = vmatprep.subr.mxu0 0.0
    %1713 = vmatpush1.msra.mxu0 0.0
    %1714 = vmatprep.subr.mxu0 0.0
    %1715 = vmatpush1.msra.mxu0 0.0
    %1716 = vmatprep.subr.mxu0 0.0
    %1717 = vmatpush1.msra.mxu0 0.0
    %1718 = vmatprep.subr.mxu0 0.0
    %1719 = vmatpush1.msra.mxu0 0.0
    %1720 = vmatprep.subr.mxu0 0.0
    %1721 = vmatpush1.msra.mxu0 0.0
    %1722 = vmatprep.subr.mxu0 0.0
    %1723 = vmatpush1.msra.mxu0 0.0
    %1724 = vmatprep.subr.mxu0 0.0
    %1725 = vmatpush1.msra.mxu0 0.0
    %1726 = vmatprep.subr.mxu0 0.0
    %1727 = vmatpush1.msra.mxu0 0.0
    %1728 = vmatprep.subr.mxu0 0.0
    %1729 = vmatpush1.msra.mxu0 0.0
    %1730 = vmatprep.subr.mxu0 0.0
    %1731 = vmatpush1.msra.mxu0 0.0
    %1732 = vmatprep.subr.mxu0 0.0
    %1733 = vmatpush1.msra.mxu0 0.0
    %1734 = vmatprep.subr.mxu0 0.0
    %1735 = vmatpush1.msra.mxu0 0.0
    %1736 = vmatprep.subr.mxu0 0.0
    %1737 = vmatpush1.msra.mxu0 %v756
    %1738 = vmatprep.subr.mxu0 0.0
    %1739 = vmatpush2.msra.mxu0 0.0
    %1740 = vmatprep.subr.mxu0 0.0
    %1741 = vmatpush2.msra.mxu0 0.0
    %1742 = vmatprep.subr.mxu0 0.0
    %1743 = vmatpush2.msra.mxu0 0.0
    %1744 = vmatprep.subr.mxu0 0.0
    %1745 = vmatpush2.msra.mxu0 0.0
    %1746 = vmatprep.subr.mxu0 0.0
    %1747 = vmatpush2.msra.mxu0 0.0
    %1748 = vmatprep.subr.mxu0 0.0
    %1749 = vmatpush2.msra.mxu0 0.0
    %1750 = vmatprep.subr.mxu0 0.0
    %1751 = vmatpush2.msra.mxu0 0.0
    %1752 = vmatprep.subr.mxu0 0.0
    %1753 = vmatpush2.msra.mxu0 0.0
    %1754 = vmatprep.subr.mxu0 0.0
    %1755 = vmatpush2.msra.mxu0 0.0
    %1756 = vmatprep.subr.mxu0 0.0
    %1757 = vmatpush2.msra.mxu0 0.0
    %1758 = vmatprep.subr.mxu0 0.0
    %1759 = vmatpush2.msra.mxu0 0.0
    %1760 = vmatprep.subr.mxu0 0.0
    %1761 = vmatpush2.msra.mxu0 0.0
    %1762 = vmatprep.subr.mxu0 0.0
    %1763 = vmatpush2.msra.mxu0 0.0
    %1764 = vmatprep.subr.mxu0 0.0
    %1765 = vmatpush2.msra.mxu0 0.0
    %1766 = vmatprep.subr.mxu0 0.0
    %1767 = vmatpush2.msra.mxu0 0.0
    %1768 = vmatprep.subr.mxu0 0.0
    %1769 = vmatpush2.msra.mxu0 0.0
    %1770 = vmatprep.mubr.f32.mxu0 0.0
    %1771 = vmatmul.mubr.f32.gmra.mxu0 %v1704
    %v1772 = vpop.f32.mrf.mxu0
    %v1773 = vadd.f32 0.0, %v1772
    %v1774 = vpop.f32.mrf.mxu0
    %1775 = vdwg.mxu0
    %v1777 = vsel %vm998, %v1696, 0
    %1779 = vmatprep.subr.mxu0 0.0
    %1780 = vmatpush1.msra.mxu0 0.0
    %1781 = vmatprep.subr.mxu0 0.0
    %1782 = vmatpush1.msra.mxu0 0.0
    %1783 = vmatprep.subr.mxu0 0.0
    %1784 = vmatpush1.msra.mxu0 0.0
    %1785 = vmatprep.subr.mxu0 0.0
    %1786 = vmatpush1.msra.mxu0 0.0
    %1787 = vmatprep.subr.mxu0 0.0
    %1788 = vmatpush1.msra.mxu0 0.0
    %1789 = vmatprep.subr.mxu0 0.0
    %1790 = vmatpush1.msra.mxu0 0.0
    %1791 = vmatprep.subr.mxu0 0.0
    %1792 = vmatpush1.msra.mxu0 0.0
    %1793 = vmatprep.subr.mxu0 0.0
    %1794 = vmatpush1.msra.mxu0 0.0
    %1795 = vmatprep.subr.mxu0 0.0
    %1796 = vmatpush1.msra.mxu0 0.0
    %1797 = vmatprep.subr.mxu0 0.0
    %1798 = vmatpush1.msra.mxu0 0.0
    %1799 = vmatprep.subr.mxu0 0.0
    %1800 = vmatpush1.msra.mxu0 0.0
    %1801 = vmatprep.subr.mxu0 0.0
    %1802 = vmatpush1.msra.mxu0 0.0
    %1803 = vmatprep.subr.mxu0 0.0
    %1804 = vmatpush1.msra.mxu0 0.0
    %1805 = vmatprep.subr.mxu0 0.0
    %1806 = vmatpush1.msra.mxu0 0.0
    %1807 = vmatprep.subr.mxu0 0.0
    %1808 = vmatpush1.msra.mxu0 0.0
    %1809 = vmatprep.subr.mxu0 0.0
    %1810 = vmatpush1.msra.mxu0 %v761
    %1811 = vmatprep.subr.mxu0 0.0
    %1812 = vmatpush2.msra.mxu0 0.0
    %1813 = vmatprep.subr.mxu0 0.0
    %1814 = vmatpush2.msra.mxu0 0.0
    %1815 = vmatprep.subr.mxu0 0.0
    %1816 = vmatpush2.msra.mxu0 0.0
    %1817 = vmatprep.subr.mxu0 0.0
    %1818 = vmatpush2.msra.mxu0 0.0
    %1819 = vmatprep.subr.mxu0 0.0
    %1820 = vmatpush2.msra.mxu0 0.0
    %1821 = vmatprep.subr.mxu0 0.0
    %1822 = vmatpush2.msra.mxu0 0.0
    %1823 = vmatprep.subr.mxu0 0.0
    %1824 = vmatpush2.msra.mxu0 0.0
    %1825 = vmatprep.subr.mxu0 0.0
    %1826 = vmatpush2.msra.mxu0 0.0
    %1827 = vmatprep.subr.mxu0 0.0
    %1828 = vmatpush2.msra.mxu0 0.0
    %1829 = vmatprep.subr.mxu0 0.0
    %1830 = vmatpush2.msra.mxu0 0.0
    %1831 = vmatprep.subr.mxu0 0.0
    %1832 = vmatpush2.msra.mxu0 0.0
    %1833 = vmatprep.subr.mxu0 0.0
    %1834 = vmatpush2.msra.mxu0 0.0
    %1835 = vmatprep.subr.mxu0 0.0
    %1836 = vmatpush2.msra.mxu0 0.0
    %1837 = vmatprep.subr.mxu0 0.0
    %1838 = vmatpush2.msra.mxu0 0.0
    %1839 = vmatprep.subr.mxu0 0.0
    %1840 = vmatpush2.msra.mxu0 0.0
    %1841 = vmatprep.subr.mxu0 0.0
    %1842 = vmatpush2.msra.mxu0 0.0
    %1843 = vmatprep.mubr.f32.mxu0 0.0
    %1844 = vmatmul.mubr.f32.gmra.mxu0 %v1777
    %v1845 = vpop.f32.mrf.mxu0
    %v1846 = vadd.f32 0.0, %v1845
    %v1847 = vpop.f32.mrf.mxu0
    %1848 = vdwg.mxu0
    %v1850 = vsel %vm998, %v1697, 0
    %1852 = vmatprep.subr.mxu0 0.0
    %1853 = vmatpush1.msra.mxu0 0.0
    %1854 = vmatprep.subr.mxu0 0.0
    %1855 = vmatpush1.msra.mxu0 0.0
    %1856 = vmatprep.subr.mxu0 0.0
    %1857 = vmatpush1.msra.mxu0 0.0
    %1858 = vmatprep.subr.mxu0 0.0
    %1859 = vmatpush1.msra.mxu0 0.0
    %1860 = vmatprep.subr.mxu0 0.0
    %1861 = vmatpush1.msra.mxu0 0.0
    %1862 = vmatprep.subr.mxu0 0.0
    %1863 = vmatpush1.msra.mxu0 0.0
    %1864 = vmatprep.subr.mxu0 0.0
    %1865 = vmatpush1.msra.mxu0 0.0
    %1866 = vmatprep.subr.mxu0 0.0
    %1867 = vmatpush1.msra.mxu0 0.0
    %1868 = vmatprep.subr.mxu0 0.0
    %1869 = vmatpush1.msra.mxu0 0.0
    %1870 = vmatprep.subr.mxu0 0.0
    %1871 = vmatpush1.msra.mxu0 0.0
    %1872 = vmatprep.subr.mxu0 0.0
    %1873 = vmatpush1.msra.mxu0 0.0
    %1874 = vmatprep.subr.mxu0 0.0
    %1875 = vmatpush1.msra.mxu0 0.0
    %1876 = vmatprep.subr.mxu0 0.0
    %1877 = vmatpush1.msra.mxu0 0.0
    %1878 = vmatprep.subr.mxu0 0.0
    %1879 = vmatpush1.msra.mxu0 0.0
    %1880 = vmatprep.subr.mxu0 0.0
    %1881 = vmatpush1.msra.mxu0 0.0
    %1882 = vmatprep.subr.mxu0 0.0
    %1883 = vmatpush1.msra.mxu0 %v834
    %1884 = vmatprep.subr.mxu0 0.0
    %1885 = vmatpush2.msra.mxu0 0.0
    %1886 = vmatprep.subr.mxu0 0.0
    %1887 = vmatpush2.msra.mxu0 0.0
    %1888 = vmatprep.subr.mxu0 0.0
    %1889 = vmatpush2.msra.mxu0 0.0
    %1890 = vmatprep.subr.mxu0 0.0
    %1891 = vmatpush2.msra.mxu0 0.0
    %1892 = vmatprep.subr.mxu0 0.0
    %1893 = vmatpush2.msra.mxu0 0.0
    %1894 = vmatprep.subr.mxu0 0.0
    %1895 = vmatpush2.msra.mxu0 0.0
    %1896 = vmatprep.subr.mxu0 0.0
    %1897 = vmatpush2.msra.mxu0 0.0
    %1898 = vmatprep.subr.mxu0 0.0
    %1899 = vmatpush2.msra.mxu0 0.0
    %1900 = vmatprep.subr.mxu0 0.0
    %1901 = vmatpush2.msra.mxu0 0.0
    %1902 = vmatprep.subr.mxu0 0.0
    %1903 = vmatpush2.msra.mxu0 0.0
    %1904 = vmatprep.subr.mxu0 0.0
    %1905 = vmatpush2.msra.mxu0 0.0
    %1906 = vmatprep.subr.mxu0 0.0
    %1907 = vmatpush2.msra.mxu0 0.0
    %1908 = vmatprep.subr.mxu0 0.0
    %1909 = vmatpush2.msra.mxu0 0.0
    %1910 = vmatprep.subr.mxu0 0.0
    %1911 = vmatpush2.msra.mxu0 0.0
    %1912 = vmatprep.subr.mxu0 0.0
    %1913 = vmatpush2.msra.mxu0 0.0
    %1914 = vmatprep.subr.mxu0 0.0
    %1915 = vmatpush2.msra.mxu0 0.0
    %1916 = vmatprep.mubr.f32.mxu0 0.0
    %1917 = vmatmul.mubr.f32.gmra.mxu0 %v1850
    %v1918 = vpop.f32.mrf.mxu0
    %v1919 = vadd.f32 0.0, %v1918
    %v1920 = vpop.f32.mrf.mxu0
    %1921 = vdwg.mxu0
    %v1923 = vsel %vm998, %v1698, 0
    %1925 = vmatprep.subr.mxu0 0.0
    %1926 = vmatpush1.msra.mxu0 0.0
    %1927 = vmatprep.subr.mxu0 0.0
    %1928 = vmatpush1.msra.mxu0 0.0
    %1929 = vmatprep.subr.mxu0 0.0
    %1930 = vmatpush1.msra.mxu0 0.0
    %1931 = vmatprep.subr.mxu0 0.0
    %1932 = vmatpush1.msra.mxu0 0.0
    %1933 = vmatprep.subr.mxu0 0.0
    %1934 = vmatpush1.msra.mxu0 0.0
    %1935 = vmatprep.subr.mxu0 0.0
    %1936 = vmatpush1.msra.mxu0 0.0
    %1937 = vmatprep.subr.mxu0 0.0
    %1938 = vmatpush1.msra.mxu0 0.0
    %1939 = vmatprep.subr.mxu0 0.0
    %1940 = vmatpush1.msra.mxu0 0.0
    %1941 = vmatprep.subr.mxu0 0.0
    %1942 = vmatpush1.msra.mxu0 0.0
    %1943 = vmatprep.subr.mxu0 0.0
    %1944 = vmatpush1.msra.mxu0 0.0
    %1945 = vmatprep.subr.mxu0 0.0
    %1946 = vmatpush1.msra.mxu0 0.0
    %1947 = vmatprep.subr.mxu0 0.0
    %1948 = vmatpush1.msra.mxu0 0.0
    %1949 = vmatprep.subr.mxu0 0.0
    %1950 = vmatpush1.msra.mxu0 0.0
    %1951 = vmatprep.subr.mxu0 0.0
    %1952 = vmatpush1.msra.mxu0 0.0
    %1953 = vmatprep.subr.mxu0 0.0
    %1954 = vmatpush1.msra.mxu0 0.0
    %1955 = vmatprep.subr.mxu0 0.0
    %1956 = vmatpush1.msra.mxu0 %v839
    %1957 = vmatprep.subr.mxu0 0.0
    %1958 = vmatpush2.msra.mxu0 0.0
    %1959 = vmatprep.subr.mxu0 0.0
    %1960 = vmatpush2.msra.mxu0 0.0
    %1961 = vmatprep.subr.mxu0 0.0
    %1962 = vmatpush2.msra.mxu0 0.0
    %1963 = vmatprep.subr.mxu0 0.0
    %1964 = vmatpush2.msra.mxu0 0.0
    %1965 = vmatprep.subr.mxu0 0.0
    %1966 = vmatpush2.msra.mxu0 0.0
    %1967 = vmatprep.subr.mxu0 0.0
    %1968 = vmatpush2.msra.mxu0 0.0
    %1969 = vmatprep.subr.mxu0 0.0
    %1970 = vmatpush2.msra.mxu0 0.0
    %1971 = vmatprep.subr.mxu0 0.0
    %1972 = vmatpush2.msra.mxu0 0.0
    %1973 = vmatprep.subr.mxu0 0.0
    %1974 = vmatpush2.msra.mxu0 0.0
    %1975 = vmatprep.subr.mxu0 0.0
    %1976 = vmatpush2.msra.mxu0 0.0
    %1977 = vmatprep.subr.mxu0 0.0
    %1978 = vmatpush2.msra.mxu0 0.0
    %1979 = vmatprep.subr.mxu0 0.0
    %1980 = vmatpush2.msra.mxu0 0.0
    %1981 = vmatprep.subr.mxu0 0.0
    %1982 = vmatpush2.msra.mxu0 0.0
    %1983 = vmatprep.subr.mxu0 0.0
    %1984 = vmatpush2.msra.mxu0 0.0
    %1985 = vmatprep.subr.mxu0 0.0
    %1986 = vmatpush2.msra.mxu0 0.0
    %1987 = vmatprep.subr.mxu0 0.0
    %1988 = vmatpush2.msra.mxu0 0.0
    %1989 = vmatprep.mubr.f32.mxu0 0.0
    %1990 = vmatmul.mubr.f32.gmra.mxu0 %v1923
    %v1991 = vpop.f32.mrf.mxu0
    %v1992 = vadd.f32 0.0, %v1991
    %v1993 = vpop.f32.mrf.mxu0
    %1994 = vdwg.mxu0
    %v1996 = vsel %vm998, %v1699, 0
    %1998 = vmatprep.subr.mxu0 0.0
    %1999 = vmatpush1.msra.mxu0 0.0
    %2000 = vmatprep.subr.mxu0 0.0
    %2001 = vmatpush1.msra.mxu0 0.0
    %2002 = vmatprep.subr.mxu0 0.0
    %2003 = vmatpush1.msra.mxu0 0.0
    %2004 = vmatprep.subr.mxu0 0.0
    %2005 = vmatpush1.msra.mxu0 0.0
    %2006 = vmatprep.subr.mxu0 0.0
    %2007 = vmatpush1.msra.mxu0 0.0
    %2008 = vmatprep.subr.mxu0 0.0
    %2009 = vmatpush1.msra.mxu0 0.0
    %2010 = vmatprep.subr.mxu0 0.0
    %2011 = vmatpush1.msra.mxu0 0.0
    %2012 = vmatprep.subr.mxu0 0.0
    %2013 = vmatpush1.msra.mxu0 0.0
    %2014 = vmatprep.subr.mxu0 0.0
    %2015 = vmatpush1.msra.mxu0 0.0
    %2016 = vmatprep.subr.mxu0 0.0
    %2017 = vmatpush1.msra.mxu0 0.0
    %2018 = vmatprep.subr.mxu0 0.0
    %2019 = vmatpush1.msra.mxu0 0.0
    %2020 = vmatprep.subr.mxu0 0.0
    %2021 = vmatpush1.msra.mxu0 0.0
    %2022 = vmatprep.subr.mxu0 0.0
    %2023 = vmatpush1.msra.mxu0 0.0
    %2024 = vmatprep.subr.mxu0 0.0
    %2025 = vmatpush1.msra.mxu0 0.0
    %2026 = vmatprep.subr.mxu0 0.0
    %2027 = vmatpush1.msra.mxu0 0.0
    %2028 = vmatprep.subr.mxu0 0.0
    %2029 = vmatpush1.msra.mxu0 %v912
    %2030 = vmatprep.subr.mxu0 0.0
    %2031 = vmatpush2.msra.mxu0 0.0
    %2032 = vmatprep.subr.mxu0 0.0
    %2033 = vmatpush2.msra.mxu0 0.0
    %2034 = vmatprep.subr.mxu0 0.0
    %2035 = vmatpush2.msra.mxu0 0.0
    %2036 = vmatprep.subr.mxu0 0.0
    %2037 = vmatpush2.msra.mxu0 0.0
    %2038 = vmatprep.subr.mxu0 0.0
    %2039 = vmatpush2.msra.mxu0 0.0
    %2040 = vmatprep.subr.mxu0 0.0
    %2041 = vmatpush2.msra.mxu0 0.0
    %2042 = vmatprep.subr.mxu0 0.0
    %2043 = vmatpush2.msra.mxu0 0.0
    %2044 = vmatprep.subr.mxu0 0.0
    %2045 = vmatpush2.msra.mxu0 0.0
    %2046 = vmatprep.subr.mxu0 0.0
    %2047 = vmatpush2.msra.mxu0 0.0
    %2048 = vmatprep.subr.mxu0 0.0
    %2049 = vmatpush2.msra.mxu0 0.0
    %2050 = vmatprep.subr.mxu0 0.0
    %2051 = vmatpush2.msra.mxu0 0.0
    %2052 = vmatprep.subr.mxu0 0.0
    %2053 = vmatpush2.msra.mxu0 0.0
    %2054 = vmatprep.subr.mxu0 0.0
    %2055 = vmatpush2.msra.mxu0 0.0
    %2056 = vmatprep.subr.mxu0 0.0
    %2057 = vmatpush2.msra.mxu0 0.0
    %2058 = vmatprep.subr.mxu0 0.0
    %2059 = vmatpush2.msra.mxu0 0.0
    %2060 = vmatprep.subr.mxu0 0.0
    %2061 = vmatpush2.msra.mxu0 0.0
    %2062 = vmatprep.mubr.f32.mxu0 0.0
    %2063 = vmatmul.mubr.f32.gmra.mxu0 %v1996
    %v2064 = vpop.f32.mrf.mxu0
    %v2065 = vadd.f32 0.0, %v2064
    %v2066 = vpop.f32.mrf.mxu0
    %2067 = vdwg.mxu0
    %v2069 = vsel %vm998, %v1700, 0
    %2071 = vmatprep.subr.mxu0 0.0
    %2072 = vmatpush1.msra.mxu0 0.0
    %2073 = vmatprep.subr.mxu0 0.0
    %2074 = vmatpush1.msra.mxu0 0.0
    %2075 = vmatprep.subr.mxu0 0.0
    %2076 = vmatpush1.msra.mxu0 0.0
    %2077 = vmatprep.subr.mxu0 0.0
    %2078 = vmatpush1.msra.mxu0 0.0
    %2079 = vmatprep.subr.mxu0 0.0
    %2080 = vmatpush1.msra.mxu0 0.0
    %2081 = vmatprep.subr.mxu0 0.0
    %2082 = vmatpush1.msra.mxu0 0.0
    %2083 = vmatprep.subr.mxu0 0.0
    %2084 = vmatpush1.msra.mxu0 0.0
    %2085 = vmatprep.subr.mxu0 0.0
    %2086 = vmatpush1.msra.mxu0 0.0
    %2087 = vmatprep.subr.mxu0 0.0
    %2088 = vmatpush1.msra.mxu0 0.0
    %2089 = vmatprep.subr.mxu0 0.0
    %2090 = vmatpush1.msra.mxu0 0.0
    %2091 = vmatprep.subr.mxu0 0.0
    %2092 = vmatpush1.msra.mxu0 0.0
    %2093 = vmatprep.subr.mxu0 0.0
    %2094 = vmatpush1.msra.mxu0 0.0
    %2095 = vmatprep.subr.mxu0 0.0
    %2096 = vmatpush1.msra.mxu0 0.0
    %2097 = vmatprep.subr.mxu0 0.0
    %2098 = vmatpush1.msra.mxu0 0.0
    %2099 = vmatprep.subr.mxu0 0.0
    %2100 = vmatpush1.msra.mxu0 0.0
    %2101 = vmatprep.subr.mxu0 0.0
    %2102 = vmatpush1.msra.mxu0 %v917
    %2103 = vmatprep.subr.mxu0 0.0
    %2104 = vmatpush2.msra.mxu0 0.0
    %2105 = vmatprep.subr.mxu0 0.0
    %2106 = vmatpush2.msra.mxu0 0.0
    %2107 = vmatprep.subr.mxu0 0.0
    %2108 = vmatpush2.msra.mxu0 0.0
    %2109 = vmatprep.subr.mxu0 0.0
    %2110 = vmatpush2.msra.mxu0 0.0
    %2111 = vmatprep.subr.mxu0 0.0
    %2112 = vmatpush2.msra.mxu0 0.0
    %2113 = vmatprep.subr.mxu0 0.0
    %2114 = vmatpush2.msra.mxu0 0.0
    %2115 = vmatprep.subr.mxu0 0.0
    %2116 = vmatpush2.msra.mxu0 0.0
    %2117 = vmatprep.subr.mxu0 0.0
    %2118 = vmatpush2.msra.mxu0 0.0
    %2119 = vmatprep.subr.mxu0 0.0
    %2120 = vmatpush2.msra.mxu0 0.0
    %2121 = vmatprep.subr.mxu0 0.0
    %2122 = vmatpush2.msra.mxu0 0.0
    %2123 = vmatprep.subr.mxu0 0.0
    %2124 = vmatpush2.msra.mxu0 0.0
    %2125 = vmatprep.subr.mxu0 0.0
    %2126 = vmatpush2.msra.mxu0 0.0
    %2127 = vmatprep.subr.mxu0 0.0
    %2128 = vmatpush2.msra.mxu0 0.0
    %2129 = vmatprep.subr.mxu0 0.0
    %2130 = vmatpush2.msra.mxu0 0.0
    %2131 = vmatprep.subr.mxu0 0.0
    %2132 = vmatpush2.msra.mxu0 0.0
    %2133 = vmatprep.subr.mxu0 0.0
    %2134 = vmatpush2.msra.mxu0 0.0
    %2135 = vmatprep.mubr.f32.mxu0 0.0
    %2136 = vmatmul.mubr.f32.gmra.mxu0 %v2069
    %v2137 = vpop.f32.mrf.mxu0
    %v2138 = vadd.f32 0.0, %v2137
    %v2139 = vpop.f32.mrf.mxu0
    %2140 = vdwg.mxu0
    %v2142 = vsel %vm998, %v1701, 0
    %2144 = vmatprep.subr.mxu0 0.0
    %2145 = vmatpush1.msra.mxu0 0.0
    %2146 = vmatprep.subr.mxu0 0.0
    %2147 = vmatpush1.msra.mxu0 0.0
    %2148 = vmatprep.subr.mxu0 0.0
    %2149 = vmatpush1.msra.mxu0 0.0
    %2150 = vmatprep.subr.mxu0 0.0
    %2151 = vmatpush1.msra.mxu0 0.0
    %2152 = vmatprep.subr.mxu0 0.0
    %2153 = vmatpush1.msra.mxu0 0.0
    %2154 = vmatprep.subr.mxu0 0.0
    %2155 = vmatpush1.msra.mxu0 0.0
    %2156 = vmatprep.subr.mxu0 0.0
    %2157 = vmatpush1.msra.mxu0 0.0
    %2158 = vmatprep.subr.mxu0 0.0
    %2159 = vmatpush1.msra.mxu0 0.0
    %2160 = vmatprep.subr.mxu0 0.0
    %2161 = vmatpush1.msra.mxu0 0.0
    %2162 = vmatprep.subr.mxu0 0.0
    %2163 = vmatpush1.msra.mxu0 0.0
    %2164 = vmatprep.subr.mxu0 0.0
    %2165 = vmatpush1.msra.mxu0 0.0
    %2166 = vmatprep.subr.mxu0 0.0
    %2167 = vmatpush1.msra.mxu0 0.0
    %2168 = vmatprep.subr.mxu0 0.0
    %2169 = vmatpush1.msra.mxu0 0.0
    %2170 = vmatprep.subr.mxu0 0.0
    %2171 = vmatpush1.msra.mxu0 0.0
    %2172 = vmatprep.subr.mxu0 0.0
    %2173 = vmatpush1.msra.mxu0 0.0
    %2174 = vmatprep.subr.mxu0 0.0
    %2175 = vmatpush1.msra.mxu0 %v990
    %2176 = vmatprep.subr.mxu0 0.0
    %2177 = vmatpush2.msra.mxu0 0.0
    %2178 = vmatprep.subr.mxu0 0.0
    %2179 = vmatpush2.msra.mxu0 0.0
    %2180 = vmatprep.subr.mxu0 0.0
    %2181 = vmatpush2.msra.mxu0 0.0
    %2182 = vmatprep.subr.mxu0 0.0
    %2183 = vmatpush2.msra.mxu0 0.0
    %2184 = vmatprep.subr.mxu0 0.0
    %2185 = vmatpush2.msra.mxu0 0.0
    %2186 = vmatprep.subr.mxu0 0.0
    %2187 = vmatpush2.msra.mxu0 0.0
    %2188 = vmatprep.subr.mxu0 0.0
    %2189 = vmatpush2.msra.mxu0 0.0
    %2190 = vmatprep.subr.mxu0 0.0
    %2191 = vmatpush2.msra.mxu0 0.0
    %2192 = vmatprep.subr.mxu0 0.0
    %2193 = vmatpush2.msra.mxu0 0.0
    %2194 = vmatprep.subr.mxu0 0.0
    %2195 = vmatpush2.msra.mxu0 0.0
    %2196 = vmatprep.subr.mxu0 0.0
    %2197 = vmatpush2.msra.mxu0 0.0
    %2198 = vmatprep.subr.mxu0 0.0
    %2199 = vmatpush2.msra.mxu0 0.0
    %2200 = vmatprep.subr.mxu0 0.0
    %2201 = vmatpush2.msra.mxu0 0.0
    %2202 = vmatprep.subr.mxu0 0.0
    %2203 = vmatpush2.msra.mxu0 0.0
    %2204 = vmatprep.subr.mxu0 0.0
    %2205 = vmatpush2.msra.mxu0 0.0
    %2206 = vmatprep.subr.mxu0 0.0
    %2207 = vmatpush2.msra.mxu0 0.0
    %2208 = vmatprep.mubr.f32.mxu0 0.0
    %2209 = vmatmul.mubr.f32.gmra.mxu0 %v2142
    %v2210 = vpop.f32.mrf.mxu0
    %v2211 = vadd.f32 0.0, %v2210
    %v2212 = vpop.f32.mrf.mxu0
    %2213 = vdwg.mxu0
    %v2215 = vsel %vm998, %v1702, 0
    %2217 = vmatprep.subr.mxu0 0.0
    %2218 = vmatpush1.msra.mxu0 0.0
    %2219 = vmatprep.subr.mxu0 0.0
    %2220 = vmatpush1.msra.mxu0 0.0
    %2221 = vmatprep.subr.mxu0 0.0
    %2222 = vmatpush1.msra.mxu0 0.0
    %2223 = vmatprep.subr.mxu0 0.0
    %2224 = vmatpush1.msra.mxu0 0.0
    %2225 = vmatprep.subr.mxu0 0.0
    %2226 = vmatpush1.msra.mxu0 0.0
    %2227 = vmatprep.subr.mxu0 0.0
    %2228 = vmatpush1.msra.mxu0 0.0
    %2229 = vmatprep.subr.mxu0 0.0
    %2230 = vmatpush1.msra.mxu0 0.0
    %2231 = vmatprep.subr.mxu0 0.0
    %2232 = vmatpush1.msra.mxu0 0.0
    %2233 = vmatprep.subr.mxu0 0.0
    %2234 = vmatpush1.msra.mxu0 0.0
    %2235 = vmatprep.subr.mxu0 0.0
    %2236 = vmatpush1.msra.mxu0 0.0
    %2237 = vmatprep.subr.mxu0 0.0
    %2238 = vmatpush1.msra.mxu0 0.0
    %2239 = vmatprep.subr.mxu0 0.0
    %2240 = vmatpush1.msra.mxu0 0.0
    %2241 = vmatprep.subr.mxu0 0.0
    %2242 = vmatpush1.msra.mxu0 0.0
    %2243 = vmatprep.subr.mxu0 0.0
    %2244 = vmatpush1.msra.mxu0 0.0
    %2245 = vmatprep.subr.mxu0 0.0
    %2246 = vmatpush1.msra.mxu0 0.0
    %2247 = vmatprep.subr.mxu0 0.0
    %2248 = vmatpush1.msra.mxu0 %v995
    %2249 = vmatprep.subr.mxu0 0.0
    %2250 = vmatpush2.msra.mxu0 0.0
    %2251 = vmatprep.subr.mxu0 0.0
    %2252 = vmatpush2.msra.mxu0 0.0
    %2253 = vmatprep.subr.mxu0 0.0
    %2254 = vmatpush2.msra.mxu0 0.0
    %2255 = vmatprep.subr.mxu0 0.0
    %2256 = vmatpush2.msra.mxu0 0.0
    %2257 = vmatprep.subr.mxu0 0.0
    %2258 = vmatpush2.msra.mxu0 0.0
    %2259 = vmatprep.subr.mxu0 0.0
    %2260 = vmatpush2.msra.mxu0 0.0
    %2261 = vmatprep.subr.mxu0 0.0
    %2262 = vmatpush2.msra.mxu0 0.0
    %2263 = vmatprep.subr.mxu0 0.0
    %2264 = vmatpush2.msra.mxu0 0.0
    %2265 = vmatprep.subr.mxu0 0.0
    %2266 = vmatpush2.msra.mxu0 0.0
    %2267 = vmatprep.subr.mxu0 0.0
    %2268 = vmatpush2.msra.mxu0 0.0
    %2269 = vmatprep.subr.mxu0 0.0
    %2270 = vmatpush2.msra.mxu0 0.0
    %2271 = vmatprep.subr.mxu0 0.0
    %2272 = vmatpush2.msra.mxu0 0.0
    %2273 = vmatprep.subr.mxu0 0.0
    %2274 = vmatpush2.msra.mxu0 0.0
    %2275 = vmatprep.subr.mxu0 0.0
    %2276 = vmatpush2.msra.mxu0 0.0
    %2277 = vmatprep.subr.mxu0 0.0
    %2278 = vmatpush2.msra.mxu0 0.0
    %2279 = vmatprep.subr.mxu0 0.0
    %2280 = vmatpush2.msra.mxu0 0.0
    %2281 = vmatprep.mubr.f32.mxu0 0.0
    %2282 = vmatmul.mubr.f32.gmra.mxu0 %v2215
    %v2283 = vpop.f32.mrf.mxu0
    %v2284 = vadd.f32 0.0, %v2283
    %v2285 = vpop.f32.mrf.mxu0
    %2286 = vdwg.mxu0
    %v2287 = vld [vmem:[#allocation5 + $0x60] sm:$0xff]
    %v2288 = vld [vmem:[#allocation5 + $0x68] sm:$0xff]
    %v2289 = vld [vmem:[#allocation5 + $0x70] sm:$0xff]
    %v2290 = vld [vmem:[#allocation5 + $0x78] sm:$0xff]
    %v2292 = vsel %vm998, %v1773, 0
    %v2295 = vsel %vm998, %v1846, 0
    %2297 = vmatprep.subr.mxu0 0.0
    %2298 = vmatpush1.msra.mxu0 0.0
    %2299 = vmatprep.subr.mxu0 0.0
    %2300 = vmatpush1.msra.mxu0 0.0
    %2301 = vmatprep.subr.mxu0 0.0
    %2302 = vmatpush1.msra.mxu0 0.0
    %2303 = vmatprep.subr.mxu0 0.0
    %2304 = vmatpush1.msra.mxu0 0.0
    %2305 = vmatprep.subr.mxu0 0.0
    %2306 = vmatpush1.msra.mxu0 0.0
    %2307 = vmatprep.subr.mxu0 0.0
    %2308 = vmatpush1.msra.mxu0 0.0
    %2309 = vmatprep.subr.mxu0 0.0
    %2310 = vmatpush1.msra.mxu0 0.0
    %2311 = vmatprep.subr.mxu0 0.0
    %2312 = vmatpush1.msra.mxu0 0.0
    %2313 = vmatprep.subr.mxu0 0.0
    %2314 = vmatpush1.msra.mxu0 0.0
    %2315 = vmatprep.subr.mxu0 0.0
    %2316 = vmatpush1.msra.mxu0 0.0
    %2317 = vmatprep.subr.mxu0 0.0
    %2318 = vmatpush1.msra.mxu0 0.0
    %2319 = vmatprep.subr.mxu0 0.0
    %2320 = vmatpush1.msra.mxu0 0.0
    %2321 = vmatprep.subr.mxu0 0.0
    %2322 = vmatpush1.msra.mxu0 0.0
    %2323 = vmatprep.subr.mxu0 0.0
    %2324 = vmatpush1.msra.mxu0 0.0
    %2325 = vmatprep.subr.mxu0 0.0
    %2326 = vmatpush1.msra.mxu0 0.0
    %2327 = vmatprep.subr.mxu0 0.0
    %2328 = vmatpush1.msra.mxu0 %v2287
    %2329 = vmatprep.subr.mxu0 0.0
    %2330 = vmatpush2.msra.mxu0 0.0
    %2331 = vmatprep.subr.mxu0 0.0
    %2332 = vmatpush2.msra.mxu0 0.0
    %2333 = vmatprep.subr.mxu0 0.0
    %2334 = vmatpush2.msra.mxu0 0.0
    %2335 = vmatprep.subr.mxu0 0.0
    %2336 = vmatpush2.msra.mxu0 0.0
    %2337 = vmatprep.subr.mxu0 0.0
    %2338 = vmatpush2.msra.mxu0 0.0
    %2339 = vmatprep.subr.mxu0 0.0
    %2340 = vmatpush2.msra.mxu0 0.0
    %2341 = vmatprep.subr.mxu0 0.0
    %2342 = vmatpush2.msra.mxu0 0.0
    %2343 = vmatprep.subr.mxu0 0.0
    %2344 = vmatpush2.msra.mxu0 0.0
    %2345 = vmatprep.subr.mxu0 0.0
    %2346 = vmatpush2.msra.mxu0 0.0
    %2347 = vmatprep.subr.mxu0 0.0
    %2348 = vmatpush2.msra.mxu0 0.0
    %2349 = vmatprep.subr.mxu0 0.0
    %2350 = vmatpush2.msra.mxu0 0.0
    %2351 = vmatprep.subr.mxu0 0.0
    %2352 = vmatpush2.msra.mxu0 0.0
    %2353 = vmatprep.subr.mxu0 0.0
    %2354 = vmatpush2.msra.mxu0 0.0
    %2355 = vmatprep.subr.mxu0 0.0
    %2356 = vmatpush2.msra.mxu0 0.0
    %2357 = vmatprep.subr.mxu0 0.0
    %2358 = vmatpush2.msra.mxu0 0.0
    %2359 = vmatprep.subr.mxu0 0.0
    %2360 = vmatpush2.msra.mxu0 0.0
    %2361 = vmatprep.mubr.f32.mxu0 0.0
    %2362 = vmatmul.mubr.f32.gmra.mxu0 %v2292
    %v2363 = vpop.f32.mrf.mxu0
    %v2364 = vadd.f32 0.0, %v2363
    %v2365 = vpop.f32.mrf.mxu0
    %2366 = vmatprep.mubr.f32.mxu0 0.0
    %2367 = vmatmul.mubr.f32.gmra.mxu0 %v2295
    %v2368 = vpop.f32.mrf.mxu0
    %v2369 = vadd.f32 0.0, %v2368
    %v2370 = vpop.f32.mrf.mxu0
    %2371 = vdwg.mxu0
    %v2373 = vsel %vm998, %v1919, 0
    %v2376 = vsel %vm998, %v1992, 0
    %2378 = vmatprep.subr.mxu0 0.0
    %2379 = vmatpush1.msra.mxu0 0.0
    %2380 = vmatprep.subr.mxu0 0.0
    %2381 = vmatpush1.msra.mxu0 0.0
    %2382 = vmatprep.subr.mxu0 0.0
    %2383 = vmatpush1.msra.mxu0 0.0
    %2384 = vmatprep.subr.mxu0 0.0
    %2385 = vmatpush1.msra.mxu0 0.0
    %2386 = vmatprep.subr.mxu0 0.0
    %2387 = vmatpush1.msra.mxu0 0.0
    %2388 = vmatprep.subr.mxu0 0.0
    %2389 = vmatpush1.msra.mxu0 0.0
    %2390 = vmatprep.subr.mxu0 0.0
    %2391 = vmatpush1.msra.mxu0 0.0
    %2392 = vmatprep.subr.mxu0 0.0
    %2393 = vmatpush1.msra.mxu0 0.0
    %2394 = vmatprep.subr.mxu0 0.0
    %2395 = vmatpush1.msra.mxu0 0.0
    %2396 = vmatprep.subr.mxu0 0.0
    %2397 = vmatpush1.msra.mxu0 0.0
    %2398 = vmatprep.subr.mxu0 0.0
    %2399 = vmatpush1.msra.mxu0 0.0
    %2400 = vmatprep.subr.mxu0 0.0
    %2401 = vmatpush1.msra.mxu0 0.0
    %2402 = vmatprep.subr.mxu0 0.0
    %2403 = vmatpush1.msra.mxu0 0.0
    %2404 = vmatprep.subr.mxu0 0.0
    %2405 = vmatpush1.msra.mxu0 0.0
    %2406 = vmatprep.subr.mxu0 0.0
    %2407 = vmatpush1.msra.mxu0 0.0
    %2408 = vmatprep.subr.mxu0 0.0
    %2409 = vmatpush1.msra.mxu0 %v2288
    %2410 = vmatprep.subr.mxu0 0.0
    %2411 = vmatpush2.msra.mxu0 0.0
    %2412 = vmatprep.subr.mxu0 0.0
    %2413 = vmatpush2.msra.mxu0 0.0
    %2414 = vmatprep.subr.mxu0 0.0
    %2415 = vmatpush2.msra.mxu0 0.0
    %2416 = vmatprep.subr.mxu0 0.0
    %2417 = vmatpush2.msra.mxu0 0.0
    %2418 = vmatprep.subr.mxu0 0.0
    %2419 = vmatpush2.msra.mxu0 0.0
    %2420 = vmatprep.subr.mxu0 0.0
    %2421 = vmatpush2.msra.mxu0 0.0
    %2422 = vmatprep.subr.mxu0 0.0
    %2423 = vmatpush2.msra.mxu0 0.0
    %2424 = vmatprep.subr.mxu0 0.0
    %2425 = vmatpush2.msra.mxu0 0.0
    %2426 = vmatprep.subr.mxu0 0.0
    %2427 = vmatpush2.msra.mxu0 0.0
    %2428 = vmatprep.subr.mxu0 0.0
    %2429 = vmatpush2.msra.mxu0 0.0
    %2430 = vmatprep.subr.mxu0 0.0
    %2431 = vmatpush2.msra.mxu0 0.0
    %2432 = vmatprep.subr.mxu0 0.0
    %2433 = vmatpush2.msra.mxu0 0.0
    %2434 = vmatprep.subr.mxu0 0.0
    %2435 = vmatpush2.msra.mxu0 0.0
    %2436 = vmatprep.subr.mxu0 0.0
    %2437 = vmatpush2.msra.mxu0 0.0
    %2438 = vmatprep.subr.mxu0 0.0
    %2439 = vmatpush2.msra.mxu0 0.0
    %2440 = vmatprep.subr.mxu0 0.0
    %2441 = vmatpush2.msra.mxu0 0.0
    %2442 = vmatprep.mubr.f32.mxu0 0.0
    %2443 = vmatmul.mubr.f32.gmra.mxu0 %v2373
    %v2444 = vpop.f32.mrf.mxu0
    %v2445 = vadd.f32 0.0, %v2444
    %v2446 = vpop.f32.mrf.mxu0
    %2447 = vmatprep.mubr.f32.mxu0 0.0
    %2448 = vmatmul.mubr.f32.gmra.mxu0 %v2376
    %v2449 = vpop.f32.mrf.mxu0
    %v2450 = vadd.f32 0.0, %v2449
    %v2451 = vpop.f32.mrf.mxu0
    %2452 = vdwg.mxu0
    %v2454 = vsel %vm998, %v2065, 0
    %v2457 = vsel %vm998, %v2138, 0
    %2459 = vmatprep.subr.mxu0 0.0
    %2460 = vmatpush1.msra.mxu0 0.0
    %2461 = vmatprep.subr.mxu0 0.0
    %2462 = vmatpush1.msra.mxu0 0.0
    %2463 = vmatprep.subr.mxu0 0.0
    %2464 = vmatpush1.msra.mxu0 0.0
    %2465 = vmatprep.subr.mxu0 0.0
    %2466 = vmatpush1.msra.mxu0 0.0
    %2467 = vmatprep.subr.mxu0 0.0
    %2468 = vmatpush1.msra.mxu0 0.0
    %2469 = vmatprep.subr.mxu0 0.0
    %2470 = vmatpush1.msra.mxu0 0.0
    %2471 = vmatprep.subr.mxu0 0.0
    %2472 = vmatpush1.msra.mxu0 0.0
    %2473 = vmatprep.subr.mxu0 0.0
    %2474 = vmatpush1.msra.mxu0 0.0
    %2475 = vmatprep.subr.mxu0 0.0
    %2476 = vmatpush1.msra.mxu0 0.0
    %2477 = vmatprep.subr.mxu0 0.0
    %2478 = vmatpush1.msra.mxu0 0.0
    %2479 = vmatprep.subr.mxu0 0.0
    %2480 = vmatpush1.msra.mxu0 0.0
    %2481 = vmatprep.subr.mxu0 0.0
    %2482 = vmatpush1.msra.mxu0 0.0
    %2483 = vmatprep.subr.mxu0 0.0
    %2484 = vmatpush1.msra.mxu0 0.0
    %2485 = vmatprep.subr.mxu0 0.0
    %2486 = vmatpush1.msra.mxu0 0.0
    %2487 = vmatprep.subr.mxu0 0.0
    %2488 = vmatpush1.msra.mxu0 0.0
    %2489 = vmatprep.subr.mxu0 0.0
    %2490 = vmatpush1.msra.mxu0 %v2289
    %2491 = vmatprep.subr.mxu0 0.0
    %2492 = vmatpush2.msra.mxu0 0.0
    %2493 = vmatprep.subr.mxu0 0.0
    %2494 = vmatpush2.msra.mxu0 0.0
    %2495 = vmatprep.subr.mxu0 0.0
    %2496 = vmatpush2.msra.mxu0 0.0
    %2497 = vmatprep.subr.mxu0 0.0
    %2498 = vmatpush2.msra.mxu0 0.0
    %2499 = vmatprep.subr.mxu0 0.0
    %2500 = vmatpush2.msra.mxu0 0.0
    %2501 = vmatprep.subr.mxu0 0.0
    %2502 = vmatpush2.msra.mxu0 0.0
    %2503 = vmatprep.subr.mxu0 0.0
    %2504 = vmatpush2.msra.mxu0 0.0
    %2505 = vmatprep.subr.mxu0 0.0
    %2506 = vmatpush2.msra.mxu0 0.0
    %2507 = vmatprep.subr.mxu0 0.0
    %2508 = vmatpush2.msra.mxu0 0.0
    %2509 = vmatprep.subr.mxu0 0.0
    %2510 = vmatpush2.msra.mxu0 0.0
    %2511 = vmatprep.subr.mxu0 0.0
    %2512 = vmatpush2.msra.mxu0 0.0
    %2513 = vmatprep.subr.mxu0 0.0
    %2514 = vmatpush2.msra.mxu0 0.0
    %2515 = vmatprep.subr.mxu0 0.0
    %2516 = vmatpush2.msra.mxu0 0.0
    %2517 = vmatprep.subr.mxu0 0.0
    %2518 = vmatpush2.msra.mxu0 0.0
    %2519 = vmatprep.subr.mxu0 0.0
    %2520 = vmatpush2.msra.mxu0 0.0
    %2521 = vmatprep.subr.mxu0 0.0
    %2522 = vmatpush2.msra.mxu0 0.0
    %2523 = vmatprep.mubr.f32.mxu0 0.0
    %2524 = vmatmul.mubr.f32.gmra.mxu0 %v2454
    %v2525 = vpop.f32.mrf.mxu0
    %v2526 = vadd.f32 0.0, %v2525
    %v2527 = vpop.f32.mrf.mxu0
    %2528 = vmatprep.mubr.f32.mxu0 0.0
    %2529 = vmatmul.mubr.f32.gmra.mxu0 %v2457
    %v2530 = vpop.f32.mrf.mxu0
    %v2531 = vadd.f32 0.0, %v2530
    %v2532 = vpop.f32.mrf.mxu0
    %2533 = vdwg.mxu0
    %v2535 = vsel %vm998, %v2211, 0
    %v2538 = vsel %vm998, %v2284, 0
    %2540 = vmatprep.subr.mxu0 0.0
    %2541 = vmatpush1.msra.mxu0 0.0
    %2542 = vmatprep.subr.mxu0 0.0
    %2543 = vmatpush1.msra.mxu0 0.0
    %2544 = vmatprep.subr.mxu0 0.0
    %2545 = vmatpush1.msra.mxu0 0.0
    %2546 = vmatprep.subr.mxu0 0.0
    %2547 = vmatpush1.msra.mxu0 0.0
    %2548 = vmatprep.subr.mxu0 0.0
    %2549 = vmatpush1.msra.mxu0 0.0
    %2550 = vmatprep.subr.mxu0 0.0
    %2551 = vmatpush1.msra.mxu0 0.0
    %2552 = vmatprep.subr.mxu0 0.0
    %2553 = vmatpush1.msra.mxu0 0.0
    %2554 = vmatprep.subr.mxu0 0.0
    %2555 = vmatpush1.msra.mxu0 0.0
    %2556 = vmatprep.subr.mxu0 0.0
    %2557 = vmatpush1.msra.mxu0 0.0
    %2558 = vmatprep.subr.mxu0 0.0
    %2559 = vmatpush1.msra.mxu0 0.0
    %2560 = vmatprep.subr.mxu0 0.0
    %2561 = vmatpush1.msra.mxu0 0.0
    %2562 = vmatprep.subr.mxu0 0.0
    %2563 = vmatpush1.msra.mxu0 0.0
    %2564 = vmatprep.subr.mxu0 0.0
    %2565 = vmatpush1.msra.mxu0 0.0
    %2566 = vmatprep.subr.mxu0 0.0
    %2567 = vmatpush1.msra.mxu0 0.0
    %2568 = vmatprep.subr.mxu0 0.0
    %2569 = vmatpush1.msra.mxu0 0.0
    %2570 = vmatprep.subr.mxu0 0.0
    %2571 = vmatpush1.msra.mxu0 %v2290
    %2572 = vmatprep.subr.mxu0 0.0
    %2573 = vmatpush2.msra.mxu0 0.0
    %2574 = vmatprep.subr.mxu0 0.0
    %2575 = vmatpush2.msra.mxu0 0.0
    %2576 = vmatprep.subr.mxu0 0.0
    %2577 = vmatpush2.msra.mxu0 0.0
    %2578 = vmatprep.subr.mxu0 0.0
    %2579 = vmatpush2.msra.mxu0 0.0
    %2580 = vmatprep.subr.mxu0 0.0
    %2581 = vmatpush2.msra.mxu0 0.0
    %2582 = vmatprep.subr.mxu0 0.0
    %2583 = vmatpush2.msra.mxu0 0.0
    %2584 = vmatprep.subr.mxu0 0.0
    %2585 = vmatpush2.msra.mxu0 0.0
    %2586 = vmatprep.subr.mxu0 0.0
    %2587 = vmatpush2.msra.mxu0 0.0
    %2588 = vmatprep.subr.mxu0 0.0
    %2589 = vmatpush2.msra.mxu0 0.0
    %2590 = vmatprep.subr.mxu0 0.0
    %2591 = vmatpush2.msra.mxu0 0.0
    %2592 = vmatprep.subr.mxu0 0.0
    %2593 = vmatpush2.msra.mxu0 0.0
    %2594 = vmatprep.subr.mxu0 0.0
    %2595 = vmatpush2.msra.mxu0 0.0
    %2596 = vmatprep.subr.mxu0 0.0
    %2597 = vmatpush2.msra.mxu0 0.0
    %2598 = vmatprep.subr.mxu0 0.0
    %2599 = vmatpush2.msra.mxu0 0.0
    %2600 = vmatprep.subr.mxu0 0.0
    %2601 = vmatpush2.msra.mxu0 0.0
    %2602 = vmatprep.subr.mxu0 0.0
    %2603 = vmatpush2.msra.mxu0 0.0
    %2604 = vmatprep.mubr.f32.mxu0 0.0
    %2605 = vmatmul.mubr.f32.gmra.mxu0 %v2535
    %v2606 = vpop.f32.mrf.mxu0
    %v2607 = vadd.f32 0.0, %v2606
    %v2608 = vpop.f32.mrf.mxu0
    %2609 = vmatprep.mubr.f32.mxu0 0.0
    %2610 = vmatmul.mubr.f32.gmra.mxu0 %v2538
    %v2611 = vpop.f32.mrf.mxu0
    %v2612 = vadd.f32 0.0, %v2611
    %v2613 = vpop.f32.mrf.mxu0
    %2614 = vdwg.mxu0
    %vm2615 = vcmask 261120
    %v2616 = vsel %vm2615, %v2364, 0.0
    %v2617 = vsel %vm2615, %v2445, 0.0
    %v2618 = vadd.f32 %v2616, %v2617
    %v2619 = vsel %vm2615, %v2526, 0.0
    %v2620 = vadd.f32 %v2618, %v2619
    %v2621 = vsel %vm2615, %v2607, 0.0
    %v2622 = vadd.f32 %v2620, %v2621
    %v2623 = vsel %vm2615, %v2369, 0.0
    %v2624 = vsel %vm2615, %v2450, 0.0
    %v2625 = vadd.f32 %v2623, %v2624
    %v2626 = vsel %vm2615, %v2531, 0.0
    %v2627 = vadd.f32 %v2625, %v2626
    %v2628 = vsel %vm2615, %v2612, 0.0
    %v2629 = vadd.f32 %v2627, %v2628
    %v2630 = vlaneseq
    %v2631 = vshrl.u32 %v2630, 7
    %v2632 = vsub.s32 0, %v2631
    %v2633 = vrot.slane %v42, %v2632
    %v2634 = vadd.f32 %v2622, %v2633
    %v2635 = vadd.f32 %v2629, %v2633
    %v2636 = vadd.f32 %v2634, %v40
    %v2637 = vadd.f32 %v2635, %v41
    %v2638 = vsel %vm2615, %v2636, 0.0
    %2639 = vadd.xlane.f32.xlu0 %v2638
    %v2640 = vpop.xlane.xlu0 %2639
    %v2641 = vsel %vm2615, %v2637, 0.0
    %2642 = vadd.xlane.f32.xlu0 %v2641
    %v2643 = vpop.xlane.xlu0 %2642
    %v2644 = vrcp.pop 32.0
    %v2645 = vmul.f32 %v2640, %v2644
    %v2646 = vmul.f32 %v2643, %v2644
    %v2647 = vsub.f32 %v2636, %v2645
    %v2648 = vsub.f32 %v2637, %v2646
    %v2649 = vmul.f32 %v2647, %v2647
    %v2650 = vmul.f32 %v2648, %v2648
    %v2651 = vsel %vm2615, %v2649, 0.0
    %2652 = vadd.xlane.f32.xlu0 %v2651
    %v2653 = vpop.xlane.xlu0 %2652
    %v2654 = vsel %vm2615, %v2650, 0.0
    %2655 = vadd.xlane.f32.xlu0 %v2654
    %v2656 = vpop.xlane.xlu0 %2655
    %v2657 = vmul.f32 %v2653, %v2644
    %v2658 = vmul.f32 %v2656, %v2644
    %v2659 = vadd.f32 %v2657, 1e-05
    %v2660 = vadd.f32 %v2658, 1e-05
    %v2661 = vrsqrt.pop %v2659
    %v2662 = vrsqrt.pop %v2660
    %v2663 = vmul.f32 %v2647, %v2661
    %v2664 = vmul.f32 %v2648, %v2662
    %v2665 = vlaneseq
    %v2666 = vshrl.u32 %v2665, 7
    %v2667 = vsub.s32 3, %v2666
    %v2668 = vrot.slane %v42, %v2667
    %v2669 = vmul.f32 %v2663, %v2668
    %v2670 = vmul.f32 %v2664, %v2668
    %v2671 = vlaneseq
    %v2672 = vshrl.u32 %v2671, 7
    %v2673 = vsub.s32 4, %v2672
    %v2674 = vrot.slane %v42, %v2673
    %v2675 = vadd.f32 %v2669, %v2674
    %v2676 = vadd.f32 %v2670, %v2674
    %v2677 = vld [vmem:[#allocation5 + $0x80] sm:$0xff]
    %v2678 = vld [vmem:[#allocation5 + $0x88] sm:$0xff]
    %v2679 = vld [vmem:[#allocation5 + $0x90] sm:$0xff]
    %v2680 = vld [vmem:[#allocation5 + $0x98] sm:$0xff]
    %v2681 = vld [vmem:[#allocation5 + $0xa0] sm:$0xff]
    %v2682 = vld [vmem:[#allocation5 + $0xa8] sm:$0xff]
    %v2683 = vld [vmem:[#allocation5 + $0xb0] sm:$0xff]
    %v2684 = vld [vmem:[#allocation5 + $0xb8] sm:$0xff]
    %v2685 = vld [vmem:[#allocation5 + $0xc0] sm:$0xff]
    %v2686 = vld [vmem:[#allocation5 + $0xc8] sm:$0xff]
    %v2687 = vld [vmem:[#allocation5 + $0xd0] sm:$0xff]
    %v2688 = vld [vmem:[#allocation5 + $0xd8] sm:$0xff]
    %v2689 = vlaneseq
    %v2690 = vshrl.u32 %v2689, 7
    %v2691 = vsub.s32 1, %v2690
    %v2692 = vrot.slane %v42, %v2691
    %v2694 = vsel %vm2615, %v2675, 0
    %v2697 = vsel %vm2615, %v2676, 0
    %2699 = vmatprep.subr.mxu0 0.0
    %2700 = vmatpush1.msra.mxu0 0.0
    %2701 = vmatprep.subr.mxu0 0.0
    %2702 = vmatpush1.msra.mxu0 0.0
    %2703 = vmatprep.subr.mxu0 0.0
    %2704 = vmatpush1.msra.mxu0 0.0
    %2705 = vmatprep.subr.mxu0 0.0
    %2706 = vmatpush1.msra.mxu0 0.0
    %2707 = vmatprep.subr.mxu0 0.0
    %2708 = vmatpush1.msra.mxu0 0.0
    %2709 = vmatprep.subr.mxu0 0.0
    %2710 = vmatpush1.msra.mxu0 0.0
    %2711 = vmatprep.subr.mxu0 0.0
    %2712 = vmatpush1.msra.mxu0 0.0
    %2713 = vmatprep.subr.mxu0 0.0
    %2714 = vmatpush1.msra.mxu0 0.0
    %2715 = vmatprep.subr.mxu0 0.0
    %2716 = vmatpush1.msra.mxu0 0.0
    %2717 = vmatprep.subr.mxu0 0.0
    %2718 = vmatpush1.msra.mxu0 0.0
    %2719 = vmatprep.subr.mxu0 0.0
    %2720 = vmatpush1.msra.mxu0 0.0
    %2721 = vmatprep.subr.mxu0 0.0
    %2722 = vmatpush1.msra.mxu0 0.0
    %2723 = vmatprep.subr.mxu0 0.0
    %2724 = vmatpush1.msra.mxu0 %v2680
    %2725 = vmatprep.subr.mxu0 0.0
    %2726 = vmatpush1.msra.mxu0 %v2679
    %2727 = vmatprep.subr.mxu0 0.0
    %2728 = vmatpush1.msra.mxu0 %v2678
    %2729 = vmatprep.subr.mxu0 0.0
    %2730 = vmatpush1.msra.mxu0 %v2677
    %2731 = vmatprep.subr.mxu0 0.0
    %2732 = vmatpush2.msra.mxu0 0.0
    %2733 = vmatprep.subr.mxu0 0.0
    %2734 = vmatpush2.msra.mxu0 0.0
    %2735 = vmatprep.subr.mxu0 0.0
    %2736 = vmatpush2.msra.mxu0 0.0
    %2737 = vmatprep.subr.mxu0 0.0
    %2738 = vmatpush2.msra.mxu0 0.0
    %2739 = vmatprep.subr.mxu0 0.0
    %2740 = vmatpush2.msra.mxu0 0.0
    %2741 = vmatprep.subr.mxu0 0.0
    %2742 = vmatpush2.msra.mxu0 0.0
    %2743 = vmatprep.subr.mxu0 0.0
    %2744 = vmatpush2.msra.mxu0 0.0
    %2745 = vmatprep.subr.mxu0 0.0
    %2746 = vmatpush2.msra.mxu0 0.0
    %2747 = vmatprep.subr.mxu0 0.0
    %2748 = vmatpush2.msra.mxu0 0.0
    %2749 = vmatprep.subr.mxu0 0.0
    %2750 = vmatpush2.msra.mxu0 0.0
    %2751 = vmatprep.subr.mxu0 0.0
    %2752 = vmatpush2.msra.mxu0 0.0
    %2753 = vmatprep.subr.mxu0 0.0
    %2754 = vmatpush2.msra.mxu0 0.0
    %2755 = vmatprep.subr.mxu0 0.0
    %2756 = vmatpush2.msra.mxu0 0.0
    %2757 = vmatprep.subr.mxu0 0.0
    %2758 = vmatpush2.msra.mxu0 0.0
    %2759 = vmatprep.subr.mxu0 0.0
    %2760 = vmatpush2.msra.mxu0 0.0
    %2761 = vmatprep.subr.mxu0 0.0
    %2762 = vmatpush2.msra.mxu0 0.0
    %2763 = vmatprep.mubr.f32.mxu0 0.0
    %2764 = vmatmul.mubr.f32.gmra.mxu0 %v2694
    %v2765 = vpop.f32.mrf.mxu0
    %v2766 = vadd.f32 %v2692, %v2765
    %v2767 = vpop.f32.mrf.mxu0
    %2768 = vmatprep.mubr.f32.mxu0 0.0
    %2769 = vmatmul.mubr.f32.gmra.mxu0 %v2697
    %v2770 = vpop.f32.mrf.mxu0
    %v2771 = vadd.f32 %v2692, %v2770
    %v2772 = vpop.f32.mrf.mxu0
    %2773 = vdwg.mxu0
    %v2774 = vmul.f32 %v2766, 0.5
    %v2775 = vmul.f32 %v2771, 0.5
    %v2776 = vmul.f32 %v2766, 0.044715
    %v2777 = vmul.f32 %v2771, 0.044715
    %v2778 = vmul.f32 %v2776, %v2766
    %v2779 = vmul.f32 %v2777, %v2771
    %v2780 = vmul.f32 %v2778, %v2766
    %v2781 = vmul.f32 %v2779, %v2771
    %v2782 = vadd.f32 %v2766, %v2780
    %v2783 = vadd.f32 %v2771, %v2781
    %v2784 = vmul.f32 %v2782, 0.7978846
    %v2785 = vmul.f32 %v2783, 0.7978846
    %v2786 = vtanh.pop %v2784
    %v2787 = vtanh.pop %v2785
    %v2788 = vadd.f32 %v2786, 1.0
    %v2789 = vadd.f32 %v2787, 1.0
    %v2790 = vmul.f32 %v2774, %v2788
    %v2791 = vmul.f32 %v2775, %v2789
    %v2792 = vlaneseq
    %v2793 = vshrl.u32 %v2792, 7
    %v2794 = vsub.s32 2, %v2793
    %v2795 = vrot.slane %v42, %v2794
    %vm2796 = vcmask 523264
    %v2798 = vsel %vm2796, %v2790, 0
    %v2801 = vsel %vm2796, %v2791, 0
    %2803 = vmatprep.subr.mxu0 0.0
    %2804 = vmatpush1.msra.mxu0 0.0
    %2805 = vmatprep.subr.mxu0 0.0
    %2806 = vmatpush1.msra.mxu0 0.0
    %2807 = vmatprep.subr.mxu0 0.0
    %2808 = vmatpush1.msra.mxu0 0.0
    %2809 = vmatprep.subr.mxu0 0.0
    %2810 = vmatpush1.msra.mxu0 0.0
    %2811 = vmatprep.subr.mxu0 0.0
    %2812 = vmatpush1.msra.mxu0 0.0
    %2813 = vmatprep.subr.mxu0 0.0
    %2814 = vmatpush1.msra.mxu0 0.0
    %2815 = vmatprep.subr.mxu0 0.0
    %2816 = vmatpush1.msra.mxu0 0.0
    %2817 = vmatprep.subr.mxu0 0.0
    %2818 = vmatpush1.msra.mxu0 0.0
    %2819 = vmatprep.subr.mxu0 0.0
    %2820 = vmatpush1.msra.mxu0 %v2688
    %2821 = vmatprep.subr.mxu0 0.0
    %2822 = vmatpush1.msra.mxu0 %v2687
    %2823 = vmatprep.subr.mxu0 0.0
    %2824 = vmatpush1.msra.mxu0 %v2686
    %2825 = vmatprep.subr.mxu0 0.0
    %2826 = vmatpush1.msra.mxu0 %v2685
    %2827 = vmatprep.subr.mxu0 0.0
    %2828 = vmatpush1.msra.mxu0 %v2684
    %2829 = vmatprep.subr.mxu0 0.0
    %2830 = vmatpush1.msra.mxu0 %v2683
    %2831 = vmatprep.subr.mxu0 0.0
    %2832 = vmatpush1.msra.mxu0 %v2682
    %2833 = vmatprep.subr.mxu0 0.0
    %2834 = vmatpush1.msra.mxu0 %v2681
    %2835 = vmatprep.subr.mxu0 0.0
    %2836 = vmatpush2.msra.mxu0 0.0
    %2837 = vmatprep.subr.mxu0 0.0
    %2838 = vmatpush2.msra.mxu0 0.0
    %2839 = vmatprep.subr.mxu0 0.0
    %2840 = vmatpush2.msra.mxu0 0.0
    %2841 = vmatprep.subr.mxu0 0.0
    %2842 = vmatpush2.msra.mxu0 0.0
    %2843 = vmatprep.subr.mxu0 0.0
    %2844 = vmatpush2.msra.mxu0 0.0
    %2845 = vmatprep.subr.mxu0 0.0
    %2846 = vmatpush2.msra.mxu0 0.0
    %2847 = vmatprep.subr.mxu0 0.0
    %2848 = vmatpush2.msra.mxu0 0.0
    %2849 = vmatprep.subr.mxu0 0.0
    %2850 = vmatpush2.msra.mxu0 0.0
    %2851 = vmatprep.subr.mxu0 0.0
    %2852 = vmatpush2.msra.mxu0 0.0
    %2853 = vmatprep.subr.mxu0 0.0
    %2854 = vmatpush2.msra.mxu0 0.0
    %2855 = vmatprep.subr.mxu0 0.0
    %2856 = vmatpush2.msra.mxu0 0.0
    %2857 = vmatprep.subr.mxu0 0.0
    %2858 = vmatpush2.msra.mxu0 0.0
    %2859 = vmatprep.subr.mxu0 0.0
    %2860 = vmatpush2.msra.mxu0 0.0
    %2861 = vmatprep.subr.mxu0 0.0
    %2862 = vmatpush2.msra.mxu0 0.0
    %2863 = vmatprep.subr.mxu0 0.0
    %2864 = vmatpush2.msra.mxu0 0.0
    %2865 = vmatprep.subr.mxu0 0.0
    %2866 = vmatpush2.msra.mxu0 0.0
    %2867 = vmatprep.mubr.f32.mxu0 0.0
    %2868 = vmatmul.mubr.f32.gmra.mxu0 %v2798
    %v2869 = vpop.f32.mrf.mxu0
    %v2870 = vadd.f32 %v2795, %v2869
    %v2871 = vpop.f32.mrf.mxu0
    %2872 = vmatprep.mubr.f32.mxu0 0.0
    %2873 = vmatmul.mubr.f32.gmra.mxu0 %v2801
    %v2874 = vpop.f32.mrf.mxu0
    %v2875 = vadd.f32 %v2795, %v2874
    %v2876 = vpop.f32.mrf.mxu0
    %2877 = vdwg.mxu0
    %v2878 = vadd.f32 %v2870, %v2675
    %v2879 = vadd.f32 %v2875, %v2676
    %v2880 = vsel %vm2615, %v2878, 0.0
    %2881 = vadd.xlane.f32.xlu0 %v2880
    %v2882 = vpop.xlane.xlu0 %2881
    %v2883 = vsel %vm2615, %v2879, 0.0
    %2884 = vadd.xlane.f32.xlu0 %v2883
    %v2885 = vpop.xlane.xlu0 %2884
    %v2886 = vmul.f32 %v2882, %v2644
    %v2887 = vmul.f32 %v2885, %v2644
    %v2888 = vsub.f32 %v2878, %v2886
    %v2889 = vsub.f32 %v2879, %v2887
    %v2890 = vmul.f32 %v2888, %v2888
    %v2891 = vmul.f32 %v2889, %v2889
    %v2892 = vsel %vm2615, %v2890, 0.0
    %2893 = vadd.xlane.f32.xlu0 %v2892
    %v2894 = vpop.xlane.xlu0 %2893
    %v2895 = vsel %vm2615, %v2891, 0.0
    %2896 = vadd.xlane.f32.xlu0 %v2895
    %v2897 = vpop.xlane.xlu0 %2896
    %v2898 = vmul.f32 %v2894, %v2644
    %v2899 = vmul.f32 %v2897, %v2644
    %v2900 = vadd.f32 %v2898, 1e-05
    %v2901 = vadd.f32 %v2899, 1e-05
    %v2902 = vrsqrt.pop %v2900
    %v2903 = vrsqrt.pop %v2901
    %v2904 = vmul.f32 %v2888, %v2902
    %v2905 = vmul.f32 %v2889, %v2903
    %v2906 = vlaneseq
    %v2907 = vshrl.u32 %v2906, 7
    %v2908 = vsub.s32 5, %v2907
    %v2909 = vrot.slane %v42, %v2908
    %v2910 = vmul.f32 %v2904, %v2909
    %v2911 = vmul.f32 %v2905, %v2909
    %v2912 = vlaneseq
    %v2913 = vshrl.u32 %v2912, 7
    %v2914 = vsub.s32 6, %v2913
    %v2915 = vrot.slane %v42, %v2914
    %v2916 = vadd.f32 %v2910, %v2915
    %v2917 = vadd.f32 %v2911, %v2915
    %2918 = vst.msk [vmem:[#allocation7] sm:$0xff] %vm2615, %v2916
    %2919 = vst.msk [vmem:[#allocation7 + $0x8] sm:$0xff] %vm2615, %v2917
    // Predicated region
    $region18: #{tpu_custom_call.1} parent=1 // pred_check
      _
    $region19: #{tpu_custom_call.1} parent=1 // pred_check_branch
      %2921 = sbr.rel (0) target = $region21
    $region20: #{tpu_custom_call.1} parent=1 // pred_region
      %s2923 = ssub.s32 256, 256
      %2924 = vsyncadd [#allocation4], %s2923
      %s2925 = sshll.u32 [#allocation7], 4
      %s2926 = int_to_ptr.vmem [resolvable:$true] %s2925
      %2931 = dma.vmem_to_hbm [thread:$0]  %s2926, 256, %s2, [#allocation4], 128, 128, 8
    $region21: #{tpu_custom_call.1} parent=1 // pred_fallthru
      _
    // Predicated region
    $region22: #{tpu_custom_call.1} parent=1 // pred_check
      _
    $region23: #{tpu_custom_call.1} parent=1 // pred_check_branch
      %2933 = sbr.rel (0) target = $region25
    $region24: #{tpu_custom_call.1} parent=1 // pred_region
      %2934 = dma.done [#allocation4], 256
    $region25: #{tpu_custom_call.1} parent=1 // pred_fallthru
      _
    %2935 = vsyncpa [#allocation3], 1
    %2936 = vsyncpa [#allocation6], 1
    %2937 = vsyncpa [#allocation4], 1

</llo_original>
